<compile_context>
chip_gen: v7x
topology: tpu7x:2x2x1
jax: 0.10.0
libtpu: 0.0.40
codegen_flags: <defaults>
</compile_context>

<pallas_src>
import jax
import jax.numpy as jnp
from jax.experimental import pallas as pl
from jax.experimental.pallas import tpu as pltpu

STATE_DIM = 3      # Pendulum-v1 observation_space.shape[0]
ACTION_DIM = 1     # Pendulum-v1 action_space.shape[0]
H_MEAN = 100       # hidden width of the mean branch
H_STD = 200        # hidden width of the std branch

# Lane-padded hidden widths (multiples of 128) for the fused hidden slab.
H_MEAN_PAD = 128
H_STD_PAD = 256
H_TOT = H_MEAN_PAD + H_STD_PAD          # 384
OUT_LANES = 128                         # lane-padded layer-2 output width


def _actor_kernel(x_ref, w1_ref, b1_ref, w2_ref, b2_ref, mean_ref, std_ref):
    """Fused SAC-actor forward for one batch tile.

    x_ref   : (TB, 3)      state tile
    w1_ref  : (3, 384)     packed layer-1 weight  [Wm1 | 0 | Ws1 | 0]
    b1_ref  : (1, 384)     packed layer-1 bias
    w2_ref  : (384, 128)   packed layer-2 weight (col 0 = mean, col 1 = std)
    b2_ref  : (1, 128)     packed layer-2 bias row
    mean_ref: (TB, 1)      tanh(mean head)
    std_ref : (TB, 1)      exp(std head)
    """
    x = x_ref[...]                                   # (TB, 3)
    w1 = w1_ref[...]                                 # (3, 384)
    b1 = b1_ref[...]                                 # (1, 384)

    # ---- Layer 1 (K = 3): three VPU broadcast-FMAs over the 384-lane slab.
    # Padded lanes get 0*x + 0 bias -> 0 through ReLU.
    h = (x[:, 0:1] * w1[0:1, :]
         + x[:, 1:2] * w1[1:2, :]
         + x[:, 2:3] * w1[2:3, :]
         + b1)
    h = jnp.maximum(h, 0.0)                          # (TB, 384)

    # ---- Layer 2 on the MXU: (TB, 384) @ (384, 128) -> (TB, 128).
    # Zero-padded weight columns/lanes contribute nothing; lane 0 holds the
    # mean pre-activation, lane 1 the std pre-activation.
    pre = jnp.dot(h, w2_ref[...],
                  preferred_element_type=jnp.float32,
                  precision=jax.lax.Precision.HIGHEST) + b2_ref[...]

    # ---- Heads (EUP) stored directly into narrow lane-1 outputs.
    mean_ref[...] = jnp.tanh(pre[:, 0:1])            # (TB, 1)
    std_ref[...] = jnp.exp(pre[:, 1:2])              # (TB, 1)


def _round_up(x, m):
    return (x + m - 1) // m * m


def _pick_tile_b(B, cap):
    """Choose the batch-tile size.

    Small batches -> a single (8-rounded) tile.  Medium batches -> two tiles
    so the parallel grid axis can shard across both TensorCores on v7x.
    Large batches -> biggest multiple-of-8 tile <= cap that divides the
    8-rounded batch (no remainder padding), falling back to cap.
    """
    b8 = _round_up(B, 8)
    if b8 <= 256:
        return b8
    if b8 <= 2 * cap:
        return _round_up(-(-b8 // 2), 8)
    for tb in range(cap, 255, -8):
        if b8 % tb == 0:
            return tb
    return cap


def pack_params(p):
    """Pack the 8 PyTorch-layout params into 4 lane-dense slabs (host side)."""
    w1 = jnp.zeros((STATE_DIM, H_TOT), jnp.float32)
    w1 = w1.at[:, :H_MEAN].set(p["wm1"])
    w1 = w1.at[:, H_MEAN_PAD:H_MEAN_PAD + H_STD].set(p["ws1"])

    b1 = jnp.zeros((1, H_TOT), jnp.float32)
    b1 = b1.at[:, :H_MEAN].set(p["bm1"])
    b1 = b1.at[:, H_MEAN_PAD:H_MEAN_PAD + H_STD].set(p["bs1"])

    # Layer-2 as an MXU matrix: mean weights in column 0, std weights in
    # column 1, everything else zero.
    w2 = jnp.zeros((H_TOT, OUT_LANES), jnp.float32)
    w2 = w2.at[:H_MEAN, 0].set(p["wm2"][:, 0])
    w2 = w2.at[H_MEAN_PAD:H_MEAN_PAD + H_STD, 1].set(p["ws2"][:, 0])

    b2 = jnp.zeros((1, OUT_LANES), jnp.float32)
    b2 = b2.at[0, 0].set(p["bm2"][0, 0])
    b2 = b2.at[0, 1].set(p["bs2"][0, 0])
    return w1, b1, w2, b2


def actor_forward(state, packed, tile_b=1024):
    """state: (B, STATE_DIM) f32, packed = pack_params(...) -> (mean, std) each (B, 1)."""
    w1, b1, w2, b2 = packed
    B = state.shape[0]

    tb = _pick_tile_b(B, tile_b)
    bp = _round_up(B, tb)
    if bp != B:
        # Only remainder rows are added; _pick_tile_b tries to avoid this for
        # large batches so the whole-state copy is usually skipped.
        state = jnp.pad(state, ((0, bp - B), (0, 0)))
    grid = (bp // tb,)

    mean, std = pl.pallas_call(
        _actor_kernel,
        out_shape=(jax.ShapeDtypeStruct((bp, ACTION_DIM), jnp.float32),
                   jax.ShapeDtypeStruct((bp, ACTION_DIM), jnp.float32)),
        grid=grid,
        in_specs=[
            pl.BlockSpec((tb, STATE_DIM), lambda i: (i, 0)),          # state tile
            pl.BlockSpec((STATE_DIM, H_TOT), lambda i: (0, 0)),       # packed W1
            pl.BlockSpec((1, H_TOT), lambda i: (0, 0)),               # packed b1
            pl.BlockSpec((H_TOT, OUT_LANES), lambda i: (0, 0)),       # packed W2
            pl.BlockSpec((1, OUT_LANES), lambda i: (0, 0)),           # packed b2
        ],
        out_specs=(pl.BlockSpec((tb, ACTION_DIM), lambda i: (i, 0)),  # mean
                   pl.BlockSpec((tb, ACTION_DIM), lambda i: (i, 0))), # std
        compiler_params=pltpu.CompilerParams(
            dimension_semantics=("parallel",)),
    )(state, w1, b1, w2, b2)

    return mean[:B], std[:B]


def init_params(key):
    """PyTorch-style uniform(+-1/sqrt(fan_in)) init, weights stored (in, out)."""
    def linear(k, fan_in, fan_out):
        kw, kb = jax.random.split(k)
        bound = 1.0 / jnp.sqrt(fan_in)
        w = jax.random.uniform(kw, (fan_in, fan_out), jnp.float32, -bound, bound)
        b = jax.random.uniform(kb, (1, fan_out), jnp.float32, -bound, bound)
        return w, b

    k1, k2, k3, k4 = jax.random.split(key, 4)
    wm1, bm1 = linear(k1, STATE_DIM, H_MEAN)
    wm2, bm2 = linear(k2, H_MEAN, ACTION_DIM)
    ws1, bs1 = linear(k3, STATE_DIM, H_STD)
    ws2, bs2 = linear(k4, H_STD, ACTION_DIM)
    return dict(wm1=wm1, bm1=bm1, wm2=wm2, bm2=bm2,
                ws1=ws1, bs1=bs1, ws2=ws2, bs2=bs2)


def actor_reference(state, p):
    """Pure-JAX reference mirroring the PyTorch forward (full-f32 matmuls)."""
    dot = lambda a, b: jnp.dot(a, b, precision=jax.lax.Precision.HIGHEST)
    h_m = jnp.maximum(dot(state, p["wm1"]) + p["bm1"], 0.0)
    m = jnp.tanh(dot(h_m, p["wm2"]) + p["bm2"])
    h_s = jnp.maximum(dot(state, p["ws1"]) + p["bs1"], 0.0)
    s = jnp.exp(dot(h_s, p["ws2"]) + p["bs2"])
    return m, s


if __name__ == "__main__":
    key = jax.random.PRNGKey(0)
    kp, ks = jax.random.split(key)

    params = init_params(kp)
    packed = pack_params(params)

    batch = 8
    state = jax.random.normal(ks, (batch, STATE_DIM), jnp.float32)

    mean, std = actor_forward(state, packed)
    jax.block_until_ready((mean, std))

    mean_ref, std_ref = actor_reference(state, params)
    assert mean.shape == (batch, ACTION_DIM) and std.shape == (batch, ACTION_DIM)
    assert jnp.allclose(mean, mean_ref, atol=1e-4, rtol=1e-3)
    assert jnp.allclose(std, std_ref, atol=1e-4, rtol=1e-3)

    print("KERNEL_OK")
</pallas_src>

<mosaic_0001>
module attributes {stable_mosaic.version = 11 : i64} {
  func.func @_actor_kernel(%arg0: i32, %arg1: memref<8x3xf32, #tpu.memory_space<vmem>>, %arg2: memref<3x384xf32, #tpu.memory_space<vmem>>, %arg3: memref<1x384xf32, #tpu.memory_space<vmem>>, %arg4: memref<384x128xf32, #tpu.memory_space<vmem>>, %arg5: memref<1x128xf32, #tpu.memory_space<vmem>>, %arg6: memref<8x1xf32, #tpu.memory_space<vmem>>, %arg7: memref<8x1xf32, #tpu.memory_space<vmem>>) attributes {dimension_semantics = [#tpu.dimension_semantics<parallel>], iteration_bounds = array<i64: 1>, scalar_prefetch = 0 : i64, scratch_operands = 0 : i64, tpu.core_type = #tpu.core_type<tc>, window_params = [{transform_indices = @transform_0, window_bounds = array<i64: 8, 3>}, {pipeline_mode = #tpu.pipeline_mode<synchronous>, transform_indices = @transform_1, window_bounds = array<i64: 3, 384>}, {pipeline_mode = #tpu.pipeline_mode<synchronous>, transform_indices = @transform_2, window_bounds = array<i64: 1, 384>}, {pipeline_mode = #tpu.pipeline_mode<synchronous>, transform_indices = @transform_3, window_bounds = array<i64: 384, 128>}, {pipeline_mode = #tpu.pipeline_mode<synchronous>, transform_indices = @transform_4, window_bounds = array<i64: 1, 128>}, {transform_indices = @transform_5, window_bounds = array<i64: 8, 1>}, {transform_indices = @transform_6, window_bounds = array<i64: 8, 1>}]} {
    %c0 = arith.constant 0 : index
    %c0_0 = arith.constant 0 : index
    %0 = vector.load %arg1[%c0, %c0_0] : memref<8x3xf32, #tpu.memory_space<vmem>>, vector<8x3xf32>
    %c0_1 = arith.constant 0 : index
    %c0_2 = arith.constant 0 : index
    %1 = vector.load %arg2[%c0_1, %c0_2] : memref<3x384xf32, #tpu.memory_space<vmem>>, vector<3x384xf32>
    %c0_3 = arith.constant 0 : index
    %c0_4 = arith.constant 0 : index
    %2 = vector.load %arg3[%c0_3, %c0_4] : memref<1x384xf32, #tpu.memory_space<vmem>>, vector<1x384xf32>
    %3 = vector.extract_strided_slice %0 {offsets = [0, 0], sizes = [8, 1], strides = [1, 1]} : vector<8x3xf32> to vector<8x1xf32>
    %4 = vector.extract_strided_slice %1 {offsets = [0, 0], sizes = [1, 384], strides = [1, 1]} : vector<3x384xf32> to vector<1x384xf32>
    %5 = vector.broadcast %3 : vector<8x1xf32> to vector<8x384xf32>
    %6 = vector.broadcast %4 : vector<1x384xf32> to vector<8x384xf32>
    %7 = arith.mulf %5, %6 : vector<8x384xf32>
    %8 = vector.extract_strided_slice %0 {offsets = [0, 1], sizes = [8, 1], strides = [1, 1]} : vector<8x3xf32> to vector<8x1xf32>
    %9 = vector.extract_strided_slice %1 {offsets = [1, 0], sizes = [1, 384], strides = [1, 1]} : vector<3x384xf32> to vector<1x384xf32>
    %10 = vector.broadcast %8 : vector<8x1xf32> to vector<8x384xf32>
    %11 = vector.broadcast %9 : vector<1x384xf32> to vector<8x384xf32>
    %12 = arith.mulf %10, %11 : vector<8x384xf32>
    %13 = arith.addf %7, %12 : vector<8x384xf32>
    %14 = vector.extract_strided_slice %0 {offsets = [0, 2], sizes = [8, 1], strides = [1, 1]} : vector<8x3xf32> to vector<8x1xf32>
    %15 = vector.extract_strided_slice %1 {offsets = [2, 0], sizes = [1, 384], strides = [1, 1]} : vector<3x384xf32> to vector<1x384xf32>
    %16 = vector.broadcast %14 : vector<8x1xf32> to vector<8x384xf32>
    %17 = vector.broadcast %15 : vector<1x384xf32> to vector<8x384xf32>
    %18 = arith.mulf %16, %17 : vector<8x384xf32>
    %19 = arith.addf %13, %18 : vector<8x384xf32>
    %20 = vector.broadcast %2 : vector<1x384xf32> to vector<8x384xf32>
    %21 = arith.addf %19, %20 : vector<8x384xf32>
    %cst = arith.constant 0.000000e+00 : f32
    %22 = vector.broadcast %cst : f32 to vector<8x384xf32>
    %23 = arith.maximumf %21, %22 : vector<8x384xf32>
    %c0_5 = arith.constant 0 : index
    %c0_6 = arith.constant 0 : index
    %24 = vector.load %arg4[%c0_5, %c0_6] : memref<384x128xf32, #tpu.memory_space<vmem>>, vector<384x128xf32>
    %cst_7 = arith.constant dense<0.000000e+00> : vector<8x128xf32>
    %25 = tpu.matmul %23, %24, %cst_7 {dimension_numbers = #tpu.dot_dimension_numbers<[1], [0], [0], [1], [0, 0, 1, 1], [], []>, precision = #tpu.contract_precision<fp32>} : vector<8x384xf32>, vector<384x128xf32>, vector<8x128xf32> -> vector<8x128xf32>
    %c0_8 = arith.constant 0 : index
    %c0_9 = arith.constant 0 : index
    %26 = vector.load %arg5[%c0_8, %c0_9] : memref<1x128xf32, #tpu.memory_space<vmem>>, vector<1x128xf32>
    %27 = vector.broadcast %26 : vector<1x128xf32> to vector<8x128xf32>
    %28 = arith.addf %25, %27 : vector<8x128xf32>
    %29 = vector.extract_strided_slice %28 {offsets = [0, 0], sizes = [8, 1], strides = [1, 1]} : vector<8x128xf32> to vector<8x1xf32>
    %30 = math.tanh %29 : vector<8x1xf32>
    %c0_10 = arith.constant 0 : index
    %c0_11 = arith.constant 0 : index
    %31 = vector.load %arg6[%c0_10, %c0_11] : memref<8x1xf32, #tpu.memory_space<vmem>>, vector<8x1xf32>
    tpu.vector_store %arg6[%c0_10, %c0_11], %30 {strides = array<i32>} : memref<8x1xf32, #tpu.memory_space<vmem>>, vector<8x1xf32>,
    %32 = vector.extract_strided_slice %28 {offsets = [0, 1], sizes = [8, 1], strides = [1, 1]} : vector<8x128xf32> to vector<8x1xf32>
    %33 = math.exp %32 : vector<8x1xf32>
    %c0_12 = arith.constant 0 : index
    %c0_13 = arith.constant 0 : index
    %34 = vector.load %arg7[%c0_12, %c0_13] : memref<8x1xf32, #tpu.memory_space<vmem>>, vector<8x1xf32>
    tpu.vector_store %arg7[%c0_12, %c0_13], %33 {strides = array<i32>} : memref<8x1xf32, #tpu.memory_space<vmem>>, vector<8x1xf32>,
    return
  }
  func.func @transform_0(%arg0: i32) -> (i32, i32) {
    %c0_i32 = arith.constant 0 : i32
    %c0_i32_0 = arith.constant 0 : i32
    return %arg0, %c0_i32 : i32, i32
  }
  func.func @transform_1(%arg0: i32) -> (i32, i32) {
    %c0_i32 = arith.constant 0 : i32
    %c0_i32_0 = arith.constant 0 : i32
    %c0_i32_1 = arith.constant 0 : i32
    return %c0_i32, %c0_i32_0 : i32, i32
  }
  func.func @transform_2(%arg0: i32) -> (i32, i32) {
    %c0_i32 = arith.constant 0 : i32
    %c0_i32_0 = arith.constant 0 : i32
    %c0_i32_1 = arith.constant 0 : i32
    return %c0_i32, %c0_i32_0 : i32, i32
  }
  func.func @transform_3(%arg0: i32) -> (i32, i32) {
    %c0_i32 = arith.constant 0 : i32
    %c0_i32_0 = arith.constant 0 : i32
    %c0_i32_1 = arith.constant 0 : i32
    return %c0_i32, %c0_i32_0 : i32, i32
  }
  func.func @transform_4(%arg0: i32) -> (i32, i32) {
    %c0_i32 = arith.constant 0 : i32
    %c0_i32_0 = arith.constant 0 : i32
    %c0_i32_1 = arith.constant 0 : i32
    return %c0_i32, %c0_i32_0 : i32, i32
  }
  func.func @transform_5(%arg0: i32) -> (i32, i32) {
    %c0_i32 = arith.constant 0 : i32
    %c0_i32_0 = arith.constant 0 : i32
    return %arg0, %c0_i32 : i32, i32
  }
  func.func @transform_6(%arg0: i32) -> (i32, i32) {
    %c0_i32 = arith.constant 0 : i32
    %c0_i32_0 = arith.constant 0 : i32
    return %arg0, %c0_i32 : i32, i32
  }
}

</mosaic_0001>

<llo_original>
// kernel: tpu_custom_call.1
$region0: #{tpu_custom_call.1}
  #allocation0 [shape = 'u32[]', space=smem, size = 0x4, offset = 0x4, fixed_abs, tag = 'smem constant byte address 0x4 - core index']
  #allocation1 [shape = 'u32[144,128]{1,0:T(1,128)}', space=vmem, size = 0x12000, scoped, tag = 'internal scratch']
  %s0 = inlined_call_operand.vmem [shape: f32[8,3], index: 0, kind: input, shape index: {}]
  %s1 = inlined_call_operand.vmem [shape: f32[3,384], index: 1, kind: input, shape index: {}]
  %s2 = inlined_call_operand.vmem [shape: f32[1,384], index: 2, kind: input, shape index: {}]
  %s3 = inlined_call_operand.hbm [shape: f32[384,128], index: 3, kind: input, shape index: {}]
  %s4 = inlined_call_operand.vmem [shape: f32[1,128], index: 4, kind: input, shape index: {}]
  %s5 = inlined_call_operand.vmem [shape: f32[8,1], index: 5, kind: output, shape index: {0}]
  %s6 = inlined_call_operand.vmem [shape: f32[8,1], index: 6, kind: output, shape index: {1}]
  %7 = xla_tuple %s5, %s6
  %s8 = sld [smem:[#allocation0]]
  $region42: #{tpu_custom_call.1} parent=0
    _
  %s10 = ssub.s32 1, %s8
  %s11 = scalar_select 0, %s10, %s8
  $region1: #{tpu_custom_call.1} parent=0
    #allocation2 [shape = 'u8[196608]{0}', space=vmem, size = 0x30000, scoped, tag = 'input window, operand 3, single buffered']
    #allocation3 [shape = 's32[1]{0}', space=sflag, size = 0x4, scoped, tag = 'scoped memory for tpu_custom_call.1']
    %12 = vsyncpa [#allocation3], 0
    // Predicated region
    $region2: #{tpu_custom_call.1} parent=1 // pred_check
      _
    $region3: #{tpu_custom_call.1} parent=1 // pred_check_branch
      %14 = sbr.rel (0) target = $region5
    $region4: #{tpu_custom_call.1} parent=1 // pred_region
      _
    $region5: #{tpu_custom_call.1} parent=1 // pred_fallthru
      _
    // Predicated region
    $region6: #{tpu_custom_call.1} parent=1 // pred_check
      _
    $region7: #{tpu_custom_call.1} parent=1 // pred_check_branch
      %16 = sbr.rel (0) target = $region9
    $region8: #{tpu_custom_call.1} parent=1 // pred_region
      _
    $region9: #{tpu_custom_call.1} parent=1 // pred_fallthru
      _
    // Predicated region
    $region10: #{tpu_custom_call.1} parent=1 // pred_check
      _
    $region11: #{tpu_custom_call.1} parent=1 // pred_check_branch
      %18 = sbr.rel (0) target = $region13
    $region12: #{tpu_custom_call.1} parent=1 // pred_region
      _
    $region13: #{tpu_custom_call.1} parent=1 // pred_fallthru
      _
    // Predicated region
    $region14: #{tpu_custom_call.1} parent=1 // pred_check
      _
    $region15: #{tpu_custom_call.1} parent=1 // pred_check_branch
      %20 = sbr.rel (0) target = $region17
    $region16: #{tpu_custom_call.1} parent=1 // pred_region
      %s22 = ssub.s32 6144, 6144
      %23 = vsyncadd [#allocation3], %s22
      %s24 = sshll.u32 [#allocation2], 4
      %s25 = int_to_ptr.vmem [resolvable:$true] %s24
      %30 = dma.hbm_to_vmem [thread:$0]  %s3, 6144, %s25, [#allocation3], 128, 128, 8
    $region17: #{tpu_custom_call.1} parent=1 // pred_fallthru
      _
    // Predicated region
    $region18: #{tpu_custom_call.1} parent=1 // pred_check
      _
    $region19: #{tpu_custom_call.1} parent=1 // pred_check_branch
      %32 = sbr.rel (0) target = $region21
    $region20: #{tpu_custom_call.1} parent=1 // pred_region
      _
    $region21: #{tpu_custom_call.1} parent=1 // pred_fallthru
      _
    // Predicated region
    $region22: #{tpu_custom_call.1} parent=1 // pred_check
      _
    $region23: #{tpu_custom_call.1} parent=1 // pred_check_branch
      %34 = sbr.rel (0) target = $region25
    $region24: #{tpu_custom_call.1} parent=1 // pred_region
      %35 = dma.done [#allocation3], 6144
    $region25: #{tpu_custom_call.1} parent=1 // pred_fallthru
      _
    %v36 = vld [vmem:[%s0] sm:$0xff]
    %v37 = vld [vmem:[%s1] sm:$0x77]
    %v38 = vld [vmem:[%s1 + $0x8] sm:$0x7]
    %v39 = vld [vmem:[%s2] sm:$0x7]
    %41 = vset.pattern.permute.xlu0 0
    %42 = vperm.xlu0 %41, %v36
    %v43 = vpop.permute.xlu0 %42
    %v47 = vlaneseq
    %v48 = vshrl.u32 %v47, 7
    %v49 = vsub.s32 0, %v48
    %v50 = vrot.slane %v37, %v49
    %v51 = vlaneseq
    %v52 = vshrl.u32 %v51, 7
    %v53 = vsub.s32 4, %v52
    %v54 = vrot.slane %v37, %v53
    %v55 = vlaneseq
    %v56 = vshrl.u32 %v55, 7
    %v57 = vsub.s32 0, %v56
    %v58 = vrot.slane %v38, %v57
    %v62 = vlaneseq
    %v63 = vshrl.u32 %v62, 7
    %v64 = vsub.s32 0, %v63
    %v65 = vrot.slane %v50, %v64
    %v66 = vlaneseq
    %v67 = vshrl.u32 %v66, 7
    %v68 = vsub.s32 0, %v67
    %v69 = vrot.slane %v54, %v68
    %v70 = vlaneseq
    %v71 = vshrl.u32 %v70, 7
    %v72 = vsub.s32 0, %v71
    %v73 = vrot.slane %v58, %v72
    %v74 = vmul.f32 %v43, %v65
    %v75 = vmul.f32 %v43, %v69
    %v76 = vmul.f32 %v43, %v73
    %77 = vset.pattern.permute.xlu0 1
    %78 = vperm.xlu0 %77, %v36
    %v79 = vpop.permute.xlu0 %78
    %v81 = vlaneseq
    %v82 = vshrl.u32 %v81, 7
    %v83 = vsub.s32 1, %v82
    %v84 = vrot.slane %v37, %v83
    %v85 = vlaneseq
    %v86 = vshrl.u32 %v85, 7
    %v87 = vsub.s32 5, %v86
    %v88 = vrot.slane %v37, %v87
    %v89 = vlaneseq
    %v90 = vshrl.u32 %v89, 7
    %v91 = vsub.s32 1, %v90
    %v92 = vrot.slane %v38, %v91
    %v96 = vlaneseq
    %v97 = vshrl.u32 %v96, 7
    %v98 = vsub.s32 1, %v97
    %v99 = vrot.slane %v84, %v98
    %v100 = vlaneseq
    %v101 = vshrl.u32 %v100, 7
    %v102 = vsub.s32 1, %v101
    %v103 = vrot.slane %v88, %v102
    %v104 = vlaneseq
    %v105 = vshrl.u32 %v104, 7
    %v106 = vsub.s32 1, %v105
    %v107 = vrot.slane %v92, %v106
    %v108 = vmul.f32 %v79, %v99
    %v109 = vmul.f32 %v79, %v103
    %v110 = vmul.f32 %v79, %v107
    %v111 = vadd.f32 %v74, %v108
    %v112 = vadd.f32 %v75, %v109
    %v113 = vadd.f32 %v76, %v110
    %114 = vset.pattern.permute.xlu0 2
    %115 = vperm.xlu0 %114, %v36
    %v116 = vpop.permute.xlu0 %115
    %v118 = vlaneseq
    %v119 = vshrl.u32 %v118, 7
    %v120 = vsub.s32 2, %v119
    %v121 = vrot.slane %v37, %v120
    %v122 = vlaneseq
    %v123 = vshrl.u32 %v122, 7
    %v124 = vsub.s32 6, %v123
    %v125 = vrot.slane %v37, %v124
    %v126 = vlaneseq
    %v127 = vshrl.u32 %v126, 7
    %v128 = vsub.s32 2, %v127
    %v129 = vrot.slane %v38, %v128
    %v133 = vlaneseq
    %v134 = vshrl.u32 %v133, 7
    %v135 = vsub.s32 2, %v134
    %v136 = vrot.slane %v121, %v135
    %v137 = vlaneseq
    %v138 = vshrl.u32 %v137, 7
    %v139 = vsub.s32 2, %v138
    %v140 = vrot.slane %v125, %v139
    %v141 = vlaneseq
    %v142 = vshrl.u32 %v141, 7
    %v143 = vsub.s32 2, %v142
    %v144 = vrot.slane %v129, %v143
    %v145 = vmul.f32 %v116, %v136
    %v146 = vmul.f32 %v116, %v140
    %v147 = vmul.f32 %v116, %v144
    %v148 = vadd.f32 %v111, %v145
    %v149 = vadd.f32 %v112, %v146
    %v150 = vadd.f32 %v113, %v147
    %v152 = vlaneseq
    %v153 = vshrl.u32 %v152, 7
    %v154 = vsub.s32 0, %v153
    %v155 = vrot.slane %v39, %v154
    %v156 = vlaneseq
    %v157 = vshrl.u32 %v156, 7
    %v158 = vsub.s32 1, %v157
    %v159 = vrot.slane %v39, %v158
    %v160 = vlaneseq
    %v161 = vshrl.u32 %v160, 7
    %v162 = vsub.s32 2, %v161
    %v163 = vrot.slane %v39, %v162
    %v167 = vadd.f32 %v148, %v155
    %v168 = vadd.f32 %v149, %v159
    %v169 = vadd.f32 %v150, %v163
    %v170 = vmax.f32 %v167, 0.0
    %v171 = vmax.f32 %v168, 0.0
    %v172 = vmax.f32 %v169, 0.0
    %v173 = vld [vmem:[#allocation2] sm:$0xff]
    %v174 = vld [vmem:[#allocation2 + $0x8] sm:$0xff]
    %v175 = vld [vmem:[#allocation2 + $0x10] sm:$0xff]
    %v176 = vld [vmem:[#allocation2 + $0x18] sm:$0xff]
    %v177 = vld [vmem:[#allocation2 + $0x20] sm:$0xff]
    %v178 = vld [vmem:[#allocation2 + $0x28] sm:$0xff]
    %v179 = vld [vmem:[#allocation2 + $0x30] sm:$0xff]
    %v180 = vld [vmem:[#allocation2 + $0x38] sm:$0xff]
    %v181 = vld [vmem:[#allocation2 + $0x40] sm:$0xff]
    %v182 = vld [vmem:[#allocation2 + $0x48] sm:$0xff]
    %v183 = vld [vmem:[#allocation2 + $0x50] sm:$0xff]
    %v184 = vld [vmem:[#allocation2 + $0x58] sm:$0xff]
    %v185 = vld [vmem:[#allocation2 + $0x60] sm:$0xff]
    %v186 = vld [vmem:[#allocation2 + $0x68] sm:$0xff]
    %v187 = vld [vmem:[#allocation2 + $0x70] sm:$0xff]
    %v188 = vld [vmem:[#allocation2 + $0x78] sm:$0xff]
    %v189 = vld [vmem:[#allocation2 + $0x80] sm:$0xff]
    %v190 = vld [vmem:[#allocation2 + $0x88] sm:$0xff]
    %v191 = vld [vmem:[#allocation2 + $0x90] sm:$0xff]
    %v192 = vld [vmem:[#allocation2 + $0x98] sm:$0xff]
    %v193 = vld [vmem:[#allocation2 + $0xa0] sm:$0xff]
    %v194 = vld [vmem:[#allocation2 + $0xa8] sm:$0xff]
    %v195 = vld [vmem:[#allocation2 + $0xb0] sm:$0xff]
    %v196 = vld [vmem:[#allocation2 + $0xb8] sm:$0xff]
    %v197 = vld [vmem:[#allocation2 + $0xc0] sm:$0xff]
    %v198 = vld [vmem:[#allocation2 + $0xc8] sm:$0xff]
    %v199 = vld [vmem:[#allocation2 + $0xd0] sm:$0xff]
    %v200 = vld [vmem:[#allocation2 + $0xd8] sm:$0xff]
    %v201 = vld [vmem:[#allocation2 + $0xe0] sm:$0xff]
    %v202 = vld [vmem:[#allocation2 + $0xe8] sm:$0xff]
    %v203 = vld [vmem:[#allocation2 + $0xf0] sm:$0xff]
    %v204 = vld [vmem:[#allocation2 + $0xf8] sm:$0xff]
    %v205 = vld [vmem:[#allocation2 + $0x100] sm:$0xff]
    %v206 = vld [vmem:[#allocation2 + $0x108] sm:$0xff]
    %v207 = vld [vmem:[#allocation2 + $0x110] sm:$0xff]
    %v208 = vld [vmem:[#allocation2 + $0x118] sm:$0xff]
    %v209 = vld [vmem:[#allocation2 + $0x120] sm:$0xff]
    %v210 = vld [vmem:[#allocation2 + $0x128] sm:$0xff]
    %v211 = vld [vmem:[#allocation2 + $0x130] sm:$0xff]
    %v212 = vld [vmem:[#allocation2 + $0x138] sm:$0xff]
    %v213 = vld [vmem:[#allocation2 + $0x140] sm:$0xff]
    %v214 = vld [vmem:[#allocation2 + $0x148] sm:$0xff]
    %v215 = vld [vmem:[#allocation2 + $0x150] sm:$0xff]
    %v216 = vld [vmem:[#allocation2 + $0x158] sm:$0xff]
    %v217 = vld [vmem:[#allocation2 + $0x160] sm:$0xff]
    %v218 = vld [vmem:[#allocation2 + $0x168] sm:$0xff]
    %v219 = vld [vmem:[#allocation2 + $0x170] sm:$0xff]
    %v220 = vld [vmem:[#allocation2 + $0x178] sm:$0xff]
    %v221 = vld [vmem:[%s4] sm:$0x1]
    %v223 = vlaneseq
    %v224 = vshrl.u32 %v223, 7
    %v225 = vsub.s32 0, %v224
    %v226 = vrot.slane %v221, %v225
    %228 = vmatprep.subr.mxu0 0.0
    %v229 = vand.u32 %v173, 4294901760
    %230 = vmatpush1.msra.mxu0 %v229
    %231 = vmatprep.subr.mxu0 0.0
    %v232 = vand.u32 %v174, 4294901760
    %233 = vmatpush1.msra.mxu0 %v232
    %234 = vmatprep.subr.mxu0 0.0
    %v235 = vand.u32 %v175, 4294901760
    %236 = vmatpush1.msra.mxu0 %v235
    %237 = vmatprep.subr.mxu0 0.0
    %v238 = vand.u32 %v176, 4294901760
    %239 = vmatpush1.msra.mxu0 %v238
    %240 = vmatprep.subr.mxu0 0.0
    %v241 = vand.u32 %v177, 4294901760
    %242 = vmatpush1.msra.mxu0 %v241
    %243 = vmatprep.subr.mxu0 0.0
    %v244 = vand.u32 %v178, 4294901760
    %245 = vmatpush1.msra.mxu0 %v244
    %246 = vmatprep.subr.mxu0 0.0
    %v247 = vand.u32 %v179, 4294901760
    %248 = vmatpush1.msra.mxu0 %v247
    %249 = vmatprep.subr.mxu0 0.0
    %v250 = vand.u32 %v180, 4294901760
    %251 = vmatpush1.msra.mxu0 %v250
    %252 = vmatprep.subr.mxu0 0.0
    %v253 = vand.u32 %v181, 4294901760
    %254 = vmatpush1.msra.mxu0 %v253
    %255 = vmatprep.subr.mxu0 0.0
    %v256 = vand.u32 %v182, 4294901760
    %257 = vmatpush1.msra.mxu0 %v256
    %258 = vmatprep.subr.mxu0 0.0
    %v259 = vand.u32 %v183, 4294901760
    %260 = vmatpush1.msra.mxu0 %v259
    %261 = vmatprep.subr.mxu0 0.0
    %v262 = vand.u32 %v184, 4294901760
    %263 = vmatpush1.msra.mxu0 %v262
    %264 = vmatprep.subr.mxu0 0.0
    %v265 = vand.u32 %v185, 4294901760
    %266 = vmatpush1.msra.mxu0 %v265
    %267 = vmatprep.subr.mxu0 0.0
    %v268 = vand.u32 %v186, 4294901760
    %269 = vmatpush1.msra.mxu0 %v268
    %270 = vmatprep.subr.mxu0 0.0
    %v271 = vand.u32 %v187, 4294901760
    %272 = vmatpush1.msra.mxu0 %v271
    %273 = vmatprep.subr.mxu0 0.0
    %v274 = vand.u32 %v188, 4294901760
    %275 = vmatpush1.msra.mxu0 %v274
    %276 = vmatprep.subr.mxu0 0.0
    %v277 = vand.u32 %v189, 4294901760
    %278 = vmatpush1.msra.mxu0 %v277
    %279 = vmatprep.subr.mxu0 0.0
    %v280 = vand.u32 %v190, 4294901760
    %281 = vmatpush1.msra.mxu0 %v280
    %282 = vmatprep.subr.mxu0 0.0
    %v283 = vand.u32 %v191, 4294901760
    %284 = vmatpush1.msra.mxu0 %v283
    %285 = vmatprep.subr.mxu0 0.0
    %v286 = vand.u32 %v192, 4294901760
    %287 = vmatpush1.msra.mxu0 %v286
    %288 = vmatprep.subr.mxu0 0.0
    %v289 = vand.u32 %v193, 4294901760
    %290 = vmatpush1.msra.mxu0 %v289
    %291 = vmatprep.subr.mxu0 0.0
    %v292 = vand.u32 %v194, 4294901760
    %293 = vmatpush1.msra.mxu0 %v292
    %294 = vmatprep.subr.mxu0 0.0
    %v295 = vand.u32 %v195, 4294901760
    %296 = vmatpush1.msra.mxu0 %v295
    %297 = vmatprep.subr.mxu0 0.0
    %v298 = vand.u32 %v196, 4294901760
    %299 = vmatpush1.msra.mxu0 %v298
    %300 = vmatprep.subr.mxu0 0.0
    %v301 = vand.u32 %v197, 4294901760
    %302 = vmatpush1.msra.mxu0 %v301
    %303 = vmatprep.subr.mxu0 0.0
    %v304 = vand.u32 %v198, 4294901760
    %305 = vmatpush1.msra.mxu0 %v304
    %306 = vmatprep.subr.mxu0 0.0
    %v307 = vand.u32 %v199, 4294901760
    %308 = vmatpush1.msra.mxu0 %v307
    %309 = vmatprep.subr.mxu0 0.0
    %v310 = vand.u32 %v200, 4294901760
    %311 = vmatpush1.msra.mxu0 %v310
    %312 = vmatprep.subr.mxu0 0.0
    %v313 = vand.u32 %v201, 4294901760
    %314 = vmatpush1.msra.mxu0 %v313
    %315 = vmatprep.subr.mxu0 0.0
    %v316 = vand.u32 %v202, 4294901760
    %317 = vmatpush1.msra.mxu0 %v316
    %318 = vmatprep.subr.mxu0 0.0
    %v319 = vand.u32 %v203, 4294901760
    %320 = vmatpush1.msra.mxu0 %v319
    %321 = vmatprep.subr.mxu0 0.0
    %v322 = vand.u32 %v204, 4294901760
    %323 = vmatpush1.msra.mxu0 %v322
    %v324 = vand.u32 %v171, 4294901760
    %v325 = vsub.f32 %v171, %v324
    %v326 = vand.u32 %v325, 4294901760
    %v327 = vsub.f32 %v325, %v326
    %v328 = vand.u32 %v327, 4294901760
    %329 = vmatprep.mubr.f32.mxu0 %v328
    %v330 = vand.u32 %v170, 4294901760
    %v331 = vsub.f32 %v170, %v330
    %v332 = vand.u32 %v331, 4294901760
    %v333 = vsub.f32 %v331, %v332
    %v334 = vand.u32 %v333, 4294901760
    %335 = vmatmul.mubr.f32.gmra.mrb[0].mxu0 %v334
    %v336 = vpop.f32.mrb[0].mxu0
    %v337 = vadd.f32 %v226, %v336
    %v338 = vpop.f32.mrb[0].mxu0
    %339 = vdwg.mxu0
    %340 = vmatprep.subr.mxu0 0.0
    %v341 = vand.u32 %v173, 4294901760
    %v342 = vsub.f32 %v173, %v341
    %v343 = vand.u32 %v342, 4294901760
    %v344 = vsub.f32 %v342, %v343
    %v345 = vand.u32 %v344, 4294901760
    %346 = vmatpush1.msra.mxu0 %v345
    %347 = vmatprep.subr.mxu0 0.0
    %v348 = vand.u32 %v174, 4294901760
    %v349 = vsub.f32 %v174, %v348
    %v350 = vand.u32 %v349, 4294901760
    %v351 = vsub.f32 %v349, %v350
    %v352 = vand.u32 %v351, 4294901760
    %353 = vmatpush1.msra.mxu0 %v352
    %354 = vmatprep.subr.mxu0 0.0
    %v355 = vand.u32 %v175, 4294901760
    %v356 = vsub.f32 %v175, %v355
    %v357 = vand.u32 %v356, 4294901760
    %v358 = vsub.f32 %v356, %v357
    %v359 = vand.u32 %v358, 4294901760
    %360 = vmatpush1.msra.mxu0 %v359
    %361 = vmatprep.subr.mxu0 0.0
    %v362 = vand.u32 %v176, 4294901760
    %v363 = vsub.f32 %v176, %v362
    %v364 = vand.u32 %v363, 4294901760
    %v365 = vsub.f32 %v363, %v364
    %v366 = vand.u32 %v365, 4294901760
    %367 = vmatpush1.msra.mxu0 %v366
    %368 = vmatprep.subr.mxu0 0.0
    %v369 = vand.u32 %v177, 4294901760
    %v370 = vsub.f32 %v177, %v369
    %v371 = vand.u32 %v370, 4294901760
    %v372 = vsub.f32 %v370, %v371
    %v373 = vand.u32 %v372, 4294901760
    %374 = vmatpush1.msra.mxu0 %v373
    %375 = vmatprep.subr.mxu0 0.0
    %v376 = vand.u32 %v178, 4294901760
    %v377 = vsub.f32 %v178, %v376
    %v378 = vand.u32 %v377, 4294901760
    %v379 = vsub.f32 %v377, %v378
    %v380 = vand.u32 %v379, 4294901760
    %381 = vmatpush1.msra.mxu0 %v380
    %382 = vmatprep.subr.mxu0 0.0
    %v383 = vand.u32 %v179, 4294901760
    %v384 = vsub.f32 %v179, %v383
    %v385 = vand.u32 %v384, 4294901760
    %v386 = vsub.f32 %v384, %v385
    %v387 = vand.u32 %v386, 4294901760
    %388 = vmatpush1.msra.mxu0 %v387
    %389 = vmatprep.subr.mxu0 0.0
    %v390 = vand.u32 %v180, 4294901760
    %v391 = vsub.f32 %v180, %v390
    %v392 = vand.u32 %v391, 4294901760
    %v393 = vsub.f32 %v391, %v392
    %v394 = vand.u32 %v393, 4294901760
    %395 = vmatpush1.msra.mxu0 %v394
    %396 = vmatprep.subr.mxu0 0.0
    %v397 = vand.u32 %v181, 4294901760
    %v398 = vsub.f32 %v181, %v397
    %v399 = vand.u32 %v398, 4294901760
    %v400 = vsub.f32 %v398, %v399
    %v401 = vand.u32 %v400, 4294901760
    %402 = vmatpush1.msra.mxu0 %v401
    %403 = vmatprep.subr.mxu0 0.0
    %v404 = vand.u32 %v182, 4294901760
    %v405 = vsub.f32 %v182, %v404
    %v406 = vand.u32 %v405, 4294901760
    %v407 = vsub.f32 %v405, %v406
    %v408 = vand.u32 %v407, 4294901760
    %409 = vmatpush1.msra.mxu0 %v408
    %410 = vmatprep.subr.mxu0 0.0
    %v411 = vand.u32 %v183, 4294901760
    %v412 = vsub.f32 %v183, %v411
    %v413 = vand.u32 %v412, 4294901760
    %v414 = vsub.f32 %v412, %v413
    %v415 = vand.u32 %v414, 4294901760
    %416 = vmatpush1.msra.mxu0 %v415
    %417 = vmatprep.subr.mxu0 0.0
    %v418 = vand.u32 %v184, 4294901760
    %v419 = vsub.f32 %v184, %v418
    %v420 = vand.u32 %v419, 4294901760
    %v421 = vsub.f32 %v419, %v420
    %v422 = vand.u32 %v421, 4294901760
    %423 = vmatpush1.msra.mxu0 %v422
    %424 = vmatprep.subr.mxu0 0.0
    %v425 = vand.u32 %v185, 4294901760
    %v426 = vsub.f32 %v185, %v425
    %v427 = vand.u32 %v426, 4294901760
    %v428 = vsub.f32 %v426, %v427
    %v429 = vand.u32 %v428, 4294901760
    %430 = vmatpush1.msra.mxu0 %v429
    %431 = vmatprep.subr.mxu0 0.0
    %v432 = vand.u32 %v186, 4294901760
    %v433 = vsub.f32 %v186, %v432
    %v434 = vand.u32 %v433, 4294901760
    %v435 = vsub.f32 %v433, %v434
    %v436 = vand.u32 %v435, 4294901760
    %437 = vmatpush1.msra.mxu0 %v436
    %438 = vmatprep.subr.mxu0 0.0
    %v439 = vand.u32 %v187, 4294901760
    %v440 = vsub.f32 %v187, %v439
    %v441 = vand.u32 %v440, 4294901760
    %v442 = vsub.f32 %v440, %v441
    %v443 = vand.u32 %v442, 4294901760
    %444 = vmatpush1.msra.mxu0 %v443
    %445 = vmatprep.subr.mxu0 0.0
    %v446 = vand.u32 %v188, 4294901760
    %v447 = vsub.f32 %v188, %v446
    %v448 = vand.u32 %v447, 4294901760
    %v449 = vsub.f32 %v447, %v448
    %v450 = vand.u32 %v449, 4294901760
    %451 = vmatpush1.msra.mxu0 %v450
    %452 = vmatprep.subr.mxu0 0.0
    %v453 = vand.u32 %v189, 4294901760
    %v454 = vsub.f32 %v189, %v453
    %v455 = vand.u32 %v454, 4294901760
    %v456 = vsub.f32 %v454, %v455
    %v457 = vand.u32 %v456, 4294901760
    %458 = vmatpush1.msra.mxu0 %v457
    %459 = vmatprep.subr.mxu0 0.0
    %v460 = vand.u32 %v190, 4294901760
    %v461 = vsub.f32 %v190, %v460
    %v462 = vand.u32 %v461, 4294901760
    %v463 = vsub.f32 %v461, %v462
    %v464 = vand.u32 %v463, 4294901760
    %465 = vmatpush1.msra.mxu0 %v464
    %466 = vmatprep.subr.mxu0 0.0
    %v467 = vand.u32 %v191, 4294901760
    %v468 = vsub.f32 %v191, %v467
    %v469 = vand.u32 %v468, 4294901760
    %v470 = vsub.f32 %v468, %v469
    %v471 = vand.u32 %v470, 4294901760
    %472 = vmatpush1.msra.mxu0 %v471
    %473 = vmatprep.subr.mxu0 0.0
    %v474 = vand.u32 %v192, 4294901760
    %v475 = vsub.f32 %v192, %v474
    %v476 = vand.u32 %v475, 4294901760
    %v477 = vsub.f32 %v475, %v476
    %v478 = vand.u32 %v477, 4294901760
    %479 = vmatpush1.msra.mxu0 %v478
    %480 = vmatprep.subr.mxu0 0.0
    %v481 = vand.u32 %v193, 4294901760
    %v482 = vsub.f32 %v193, %v481
    %v483 = vand.u32 %v482, 4294901760
    %v484 = vsub.f32 %v482, %v483
    %v485 = vand.u32 %v484, 4294901760
    %486 = vmatpush1.msra.mxu0 %v485
    %487 = vmatprep.subr.mxu0 0.0
    %v488 = vand.u32 %v194, 4294901760
    %v489 = vsub.f32 %v194, %v488
    %v490 = vand.u32 %v489, 4294901760
    %v491 = vsub.f32 %v489, %v490
    %v492 = vand.u32 %v491, 4294901760
    %493 = vmatpush1.msra.mxu0 %v492
    %494 = vmatprep.subr.mxu0 0.0
    %v495 = vand.u32 %v195, 4294901760
    %v496 = vsub.f32 %v195, %v495
    %v497 = vand.u32 %v496, 4294901760
    %v498 = vsub.f32 %v496, %v497
    %v499 = vand.u32 %v498, 4294901760
    %500 = vmatpush1.msra.mxu0 %v499
    %501 = vmatprep.subr.mxu0 0.0
    %v502 = vand.u32 %v196, 4294901760
    %v503 = vsub.f32 %v196, %v502
    %v504 = vand.u32 %v503, 4294901760
    %v505 = vsub.f32 %v503, %v504
    %v506 = vand.u32 %v505, 4294901760
    %507 = vmatpush1.msra.mxu0 %v506
    %508 = vmatprep.subr.mxu0 0.0
    %v509 = vand.u32 %v197, 4294901760
    %v510 = vsub.f32 %v197, %v509
    %v511 = vand.u32 %v510, 4294901760
    %v512 = vsub.f32 %v510, %v511
    %v513 = vand.u32 %v512, 4294901760
    %514 = vmatpush1.msra.mxu0 %v513
    %515 = vmatprep.subr.mxu0 0.0
    %v516 = vand.u32 %v198, 4294901760
    %v517 = vsub.f32 %v198, %v516
    %v518 = vand.u32 %v517, 4294901760
    %v519 = vsub.f32 %v517, %v518
    %v520 = vand.u32 %v519, 4294901760
    %521 = vmatpush1.msra.mxu0 %v520
    %522 = vmatprep.subr.mxu0 0.0
    %v523 = vand.u32 %v199, 4294901760
    %v524 = vsub.f32 %v199, %v523
    %v525 = vand.u32 %v524, 4294901760
    %v526 = vsub.f32 %v524, %v525
    %v527 = vand.u32 %v526, 4294901760
    %528 = vmatpush1.msra.mxu0 %v527
    %529 = vmatprep.subr.mxu0 0.0
    %v530 = vand.u32 %v200, 4294901760
    %v531 = vsub.f32 %v200, %v530
    %v532 = vand.u32 %v531, 4294901760
    %v533 = vsub.f32 %v531, %v532
    %v534 = vand.u32 %v533, 4294901760
    %535 = vmatpush1.msra.mxu0 %v534
    %536 = vmatprep.subr.mxu0 0.0
    %v537 = vand.u32 %v201, 4294901760
    %v538 = vsub.f32 %v201, %v537
    %v539 = vand.u32 %v538, 4294901760
    %v540 = vsub.f32 %v538, %v539
    %v541 = vand.u32 %v540, 4294901760
    %542 = vmatpush1.msra.mxu0 %v541
    %543 = vmatprep.subr.mxu0 0.0
    %v544 = vand.u32 %v202, 4294901760
    %v545 = vsub.f32 %v202, %v544
    %v546 = vand.u32 %v545, 4294901760
    %v547 = vsub.f32 %v545, %v546
    %v548 = vand.u32 %v547, 4294901760
    %549 = vmatpush1.msra.mxu0 %v548
    %550 = vmatprep.subr.mxu0 0.0
    %v551 = vand.u32 %v203, 4294901760
    %v552 = vsub.f32 %v203, %v551
    %v553 = vand.u32 %v552, 4294901760
    %v554 = vsub.f32 %v552, %v553
    %v555 = vand.u32 %v554, 4294901760
    %556 = vmatpush1.msra.mxu0 %v555
    %557 = vmatprep.subr.mxu0 0.0
    %v558 = vand.u32 %v204, 4294901760
    %v559 = vsub.f32 %v204, %v558
    %v560 = vand.u32 %v559, 4294901760
    %v561 = vsub.f32 %v559, %v560
    %v562 = vand.u32 %v561, 4294901760
    %563 = vmatpush1.msra.mxu0 %v562
    %v564 = vand.u32 %v171, 4294901760
    %565 = vmatprep.mubr.f32.mxu0 %v564
    %v566 = vand.u32 %v170, 4294901760
    %567 = vmatmul.mubr.f32.gmra.mrb[0].mxu0 %v566
    %v568 = vpop.f32.mrb[0].mxu0
    %v569 = vadd.f32 %v337, %v568
    %v570 = vpop.f32.mrb[0].mxu0
    %571 = vdwg.mxu0
    %572 = vmatprep.subr.mxu0 0.0
    %v573 = vand.u32 %v173, 4294901760
    %v574 = vsub.f32 %v173, %v573
    %575 = vmatpush1.msra.mxu0 %v574
    %576 = vmatprep.subr.mxu0 0.0
    %v577 = vand.u32 %v174, 4294901760
    %v578 = vsub.f32 %v174, %v577
    %579 = vmatpush1.msra.mxu0 %v578
    %580 = vmatprep.subr.mxu0 0.0
    %v581 = vand.u32 %v175, 4294901760
    %v582 = vsub.f32 %v175, %v581
    %583 = vmatpush1.msra.mxu0 %v582
    %584 = vmatprep.subr.mxu0 0.0
    %v585 = vand.u32 %v176, 4294901760
    %v586 = vsub.f32 %v176, %v585
    %587 = vmatpush1.msra.mxu0 %v586
    %588 = vmatprep.subr.mxu0 0.0
    %v589 = vand.u32 %v177, 4294901760
    %v590 = vsub.f32 %v177, %v589
    %591 = vmatpush1.msra.mxu0 %v590
    %592 = vmatprep.subr.mxu0 0.0
    %v593 = vand.u32 %v178, 4294901760
    %v594 = vsub.f32 %v178, %v593
    %595 = vmatpush1.msra.mxu0 %v594
    %596 = vmatprep.subr.mxu0 0.0
    %v597 = vand.u32 %v179, 4294901760
    %v598 = vsub.f32 %v179, %v597
    %599 = vmatpush1.msra.mxu0 %v598
    %600 = vmatprep.subr.mxu0 0.0
    %v601 = vand.u32 %v180, 4294901760
    %v602 = vsub.f32 %v180, %v601
    %603 = vmatpush1.msra.mxu0 %v602
    %604 = vmatprep.subr.mxu0 0.0
    %v605 = vand.u32 %v181, 4294901760
    %v606 = vsub.f32 %v181, %v605
    %607 = vmatpush1.msra.mxu0 %v606
    %608 = vmatprep.subr.mxu0 0.0
    %v609 = vand.u32 %v182, 4294901760
    %v610 = vsub.f32 %v182, %v609
    %611 = vmatpush1.msra.mxu0 %v610
    %612 = vmatprep.subr.mxu0 0.0
    %v613 = vand.u32 %v183, 4294901760
    %v614 = vsub.f32 %v183, %v613
    %615 = vmatpush1.msra.mxu0 %v614
    %616 = vmatprep.subr.mxu0 0.0
    %v617 = vand.u32 %v184, 4294901760
    %v618 = vsub.f32 %v184, %v617
    %619 = vmatpush1.msra.mxu0 %v618
    %620 = vmatprep.subr.mxu0 0.0
    %v621 = vand.u32 %v185, 4294901760
    %v622 = vsub.f32 %v185, %v621
    %623 = vmatpush1.msra.mxu0 %v622
    %624 = vmatprep.subr.mxu0 0.0
    %v625 = vand.u32 %v186, 4294901760
    %v626 = vsub.f32 %v186, %v625
    %627 = vmatpush1.msra.mxu0 %v626
    %628 = vmatprep.subr.mxu0 0.0
    %v629 = vand.u32 %v187, 4294901760
    %v630 = vsub.f32 %v187, %v629
    %631 = vmatpush1.msra.mxu0 %v630
    %632 = vmatprep.subr.mxu0 0.0
    %v633 = vand.u32 %v188, 4294901760
    %v634 = vsub.f32 %v188, %v633
    %635 = vmatpush1.msra.mxu0 %v634
    %636 = vmatprep.subr.mxu0 0.0
    %v637 = vand.u32 %v189, 4294901760
    %v638 = vsub.f32 %v189, %v637
    %639 = vmatpush1.msra.mxu0 %v638
    %640 = vmatprep.subr.mxu0 0.0
    %v641 = vand.u32 %v190, 4294901760
    %v642 = vsub.f32 %v190, %v641
    %643 = vmatpush1.msra.mxu0 %v642
    %644 = vmatprep.subr.mxu0 0.0
    %v645 = vand.u32 %v191, 4294901760
    %v646 = vsub.f32 %v191, %v645
    %647 = vmatpush1.msra.mxu0 %v646
    %648 = vmatprep.subr.mxu0 0.0
    %v649 = vand.u32 %v192, 4294901760
    %v650 = vsub.f32 %v192, %v649
    %651 = vmatpush1.msra.mxu0 %v650
    %652 = vmatprep.subr.mxu0 0.0
    %v653 = vand.u32 %v193, 4294901760
    %v654 = vsub.f32 %v193, %v653
    %655 = vmatpush1.msra.mxu0 %v654
    %656 = vmatprep.subr.mxu0 0.0
    %v657 = vand.u32 %v194, 4294901760
    %v658 = vsub.f32 %v194, %v657
    %659 = vmatpush1.msra.mxu0 %v658
    %660 = vmatprep.subr.mxu0 0.0
    %v661 = vand.u32 %v195, 4294901760
    %v662 = vsub.f32 %v195, %v661
    %663 = vmatpush1.msra.mxu0 %v662
    %664 = vmatprep.subr.mxu0 0.0
    %v665 = vand.u32 %v196, 4294901760
    %v666 = vsub.f32 %v196, %v665
    %667 = vmatpush1.msra.mxu0 %v666
    %668 = vmatprep.subr.mxu0 0.0
    %v669 = vand.u32 %v197, 4294901760
    %v670 = vsub.f32 %v197, %v669
    %671 = vmatpush1.msra.mxu0 %v670
    %672 = vmatprep.subr.mxu0 0.0
    %v673 = vand.u32 %v198, 4294901760
    %v674 = vsub.f32 %v198, %v673
    %675 = vmatpush1.msra.mxu0 %v674
    %676 = vmatprep.subr.mxu0 0.0
    %v677 = vand.u32 %v199, 4294901760
    %v678 = vsub.f32 %v199, %v677
    %679 = vmatpush1.msra.mxu0 %v678
    %680 = vmatprep.subr.mxu0 0.0
    %v681 = vand.u32 %v200, 4294901760
    %v682 = vsub.f32 %v200, %v681
    %683 = vmatpush1.msra.mxu0 %v682
    %684 = vmatprep.subr.mxu0 0.0
    %v685 = vand.u32 %v201, 4294901760
    %v686 = vsub.f32 %v201, %v685
    %687 = vmatpush1.msra.mxu0 %v686
    %688 = vmatprep.subr.mxu0 0.0
    %v689 = vand.u32 %v202, 4294901760
    %v690 = vsub.f32 %v202, %v689
    %691 = vmatpush1.msra.mxu0 %v690
    %692 = vmatprep.subr.mxu0 0.0
    %v693 = vand.u32 %v203, 4294901760
    %v694 = vsub.f32 %v203, %v693
    %695 = vmatpush1.msra.mxu0 %v694
    %696 = vmatprep.subr.mxu0 0.0
    %v697 = vand.u32 %v204, 4294901760
    %v698 = vsub.f32 %v204, %v697
    %699 = vmatpush1.msra.mxu0 %v698
    %v700 = vand.u32 %v171, 4294901760
    %v701 = vsub.f32 %v171, %v700
    %702 = vmatprep.mubr.f32.mxu0 %v701
    %v703 = vand.u32 %v170, 4294901760
    %v704 = vsub.f32 %v170, %v703
    %705 = vmatmul.mubr.f32.gmra.mrb[0].mxu0 %v704
    %v706 = vpop.f32.mrb[0].mxu0
    %v707 = vadd.f32 %v569, %v706
    %v708 = vpop.f32.mrb[0].mxu0
    %709 = vdwg.mxu0
    %710 = vmatprep.subr.mxu0 0.0
    %v711 = vand.u32 %v173, 4294901760
    %712 = vmatpush1.msra.mxu0 %v711
    %713 = vmatprep.subr.mxu0 0.0
    %v714 = vand.u32 %v174, 4294901760
    %715 = vmatpush1.msra.mxu0 %v714
    %716 = vmatprep.subr.mxu0 0.0
    %v717 = vand.u32 %v175, 4294901760
    %718 = vmatpush1.msra.mxu0 %v717
    %719 = vmatprep.subr.mxu0 0.0
    %v720 = vand.u32 %v176, 4294901760
    %721 = vmatpush1.msra.mxu0 %v720
    %722 = vmatprep.subr.mxu0 0.0
    %v723 = vand.u32 %v177, 4294901760
    %724 = vmatpush1.msra.mxu0 %v723
    %725 = vmatprep.subr.mxu0 0.0
    %v726 = vand.u32 %v178, 4294901760
    %727 = vmatpush1.msra.mxu0 %v726
    %728 = vmatprep.subr.mxu0 0.0
    %v729 = vand.u32 %v179, 4294901760
    %730 = vmatpush1.msra.mxu0 %v729
    %731 = vmatprep.subr.mxu0 0.0
    %v732 = vand.u32 %v180, 4294901760
    %733 = vmatpush1.msra.mxu0 %v732
    %734 = vmatprep.subr.mxu0 0.0
    %v735 = vand.u32 %v181, 4294901760
    %736 = vmatpush1.msra.mxu0 %v735
    %737 = vmatprep.subr.mxu0 0.0
    %v738 = vand.u32 %v182, 4294901760
    %739 = vmatpush1.msra.mxu0 %v738
    %740 = vmatprep.subr.mxu0 0.0
    %v741 = vand.u32 %v183, 4294901760
    %742 = vmatpush1.msra.mxu0 %v741
    %743 = vmatprep.subr.mxu0 0.0
    %v744 = vand.u32 %v184, 4294901760
    %745 = vmatpush1.msra.mxu0 %v744
    %746 = vmatprep.subr.mxu0 0.0
    %v747 = vand.u32 %v185, 4294901760
    %748 = vmatpush1.msra.mxu0 %v747
    %749 = vmatprep.subr.mxu0 0.0
    %v750 = vand.u32 %v186, 4294901760
    %751 = vmatpush1.msra.mxu0 %v750
    %752 = vmatprep.subr.mxu0 0.0
    %v753 = vand.u32 %v187, 4294901760
    %754 = vmatpush1.msra.mxu0 %v753
    %755 = vmatprep.subr.mxu0 0.0
    %v756 = vand.u32 %v188, 4294901760
    %757 = vmatpush1.msra.mxu0 %v756
    %758 = vmatprep.subr.mxu0 0.0
    %v759 = vand.u32 %v189, 4294901760
    %760 = vmatpush1.msra.mxu0 %v759
    %761 = vmatprep.subr.mxu0 0.0
    %v762 = vand.u32 %v190, 4294901760
    %763 = vmatpush1.msra.mxu0 %v762
    %764 = vmatprep.subr.mxu0 0.0
    %v765 = vand.u32 %v191, 4294901760
    %766 = vmatpush1.msra.mxu0 %v765
    %767 = vmatprep.subr.mxu0 0.0
    %v768 = vand.u32 %v192, 4294901760
    %769 = vmatpush1.msra.mxu0 %v768
    %770 = vmatprep.subr.mxu0 0.0
    %v771 = vand.u32 %v193, 4294901760
    %772 = vmatpush1.msra.mxu0 %v771
    %773 = vmatprep.subr.mxu0 0.0
    %v774 = vand.u32 %v194, 4294901760
    %775 = vmatpush1.msra.mxu0 %v774
    %776 = vmatprep.subr.mxu0 0.0
    %v777 = vand.u32 %v195, 4294901760
    %778 = vmatpush1.msra.mxu0 %v777
    %779 = vmatprep.subr.mxu0 0.0
    %v780 = vand.u32 %v196, 4294901760
    %781 = vmatpush1.msra.mxu0 %v780
    %782 = vmatprep.subr.mxu0 0.0
    %v783 = vand.u32 %v197, 4294901760
    %784 = vmatpush1.msra.mxu0 %v783
    %785 = vmatprep.subr.mxu0 0.0
    %v786 = vand.u32 %v198, 4294901760
    %787 = vmatpush1.msra.mxu0 %v786
    %788 = vmatprep.subr.mxu0 0.0
    %v789 = vand.u32 %v199, 4294901760
    %790 = vmatpush1.msra.mxu0 %v789
    %791 = vmatprep.subr.mxu0 0.0
    %v792 = vand.u32 %v200, 4294901760
    %793 = vmatpush1.msra.mxu0 %v792
    %794 = vmatprep.subr.mxu0 0.0
    %v795 = vand.u32 %v201, 4294901760
    %796 = vmatpush1.msra.mxu0 %v795
    %797 = vmatprep.subr.mxu0 0.0
    %v798 = vand.u32 %v202, 4294901760
    %799 = vmatpush1.msra.mxu0 %v798
    %800 = vmatprep.subr.mxu0 0.0
    %v801 = vand.u32 %v203, 4294901760
    %802 = vmatpush1.msra.mxu0 %v801
    %803 = vmatprep.subr.mxu0 0.0
    %v804 = vand.u32 %v204, 4294901760
    %805 = vmatpush1.msra.mxu0 %v804
    %v806 = vand.u32 %v171, 4294901760
    %v807 = vsub.f32 %v171, %v806
    %v808 = vand.u32 %v807, 4294901760
    %809 = vmatprep.mubr.f32.mxu0 %v808
    %v810 = vand.u32 %v170, 4294901760
    %v811 = vsub.f32 %v170, %v810
    %v812 = vand.u32 %v811, 4294901760
    %813 = vmatmul.mubr.f32.gmra.mrb[0].mxu0 %v812
    %v814 = vpop.f32.mrb[0].mxu0
    %v815 = vadd.f32 %v707, %v814
    %v816 = vpop.f32.mrb[0].mxu0
    %817 = vdwg.mxu0
    %818 = vmatprep.subr.mxu0 0.0
    %v819 = vand.u32 %v173, 4294901760
    %v820 = vsub.f32 %v173, %v819
    %v821 = vand.u32 %v820, 4294901760
    %822 = vmatpush1.msra.mxu0 %v821
    %823 = vmatprep.subr.mxu0 0.0
    %v824 = vand.u32 %v174, 4294901760
    %v825 = vsub.f32 %v174, %v824
    %v826 = vand.u32 %v825, 4294901760
    %827 = vmatpush1.msra.mxu0 %v826
    %828 = vmatprep.subr.mxu0 0.0
    %v829 = vand.u32 %v175, 4294901760
    %v830 = vsub.f32 %v175, %v829
    %v831 = vand.u32 %v830, 4294901760
    %832 = vmatpush1.msra.mxu0 %v831
    %833 = vmatprep.subr.mxu0 0.0
    %v834 = vand.u32 %v176, 4294901760
    %v835 = vsub.f32 %v176, %v834
    %v836 = vand.u32 %v835, 4294901760
    %837 = vmatpush1.msra.mxu0 %v836
    %838 = vmatprep.subr.mxu0 0.0
    %v839 = vand.u32 %v177, 4294901760
    %v840 = vsub.f32 %v177, %v839
    %v841 = vand.u32 %v840, 4294901760
    %842 = vmatpush1.msra.mxu0 %v841
    %843 = vmatprep.subr.mxu0 0.0
    %v844 = vand.u32 %v178, 4294901760
    %v845 = vsub.f32 %v178, %v844
    %v846 = vand.u32 %v845, 4294901760
    %847 = vmatpush1.msra.mxu0 %v846
    %848 = vmatprep.subr.mxu0 0.0
    %v849 = vand.u32 %v179, 4294901760
    %v850 = vsub.f32 %v179, %v849
    %v851 = vand.u32 %v850, 4294901760
    %852 = vmatpush1.msra.mxu0 %v851
    %853 = vmatprep.subr.mxu0 0.0
    %v854 = vand.u32 %v180, 4294901760
    %v855 = vsub.f32 %v180, %v854
    %v856 = vand.u32 %v855, 4294901760
    %857 = vmatpush1.msra.mxu0 %v856
    %858 = vmatprep.subr.mxu0 0.0
    %v859 = vand.u32 %v181, 4294901760
    %v860 = vsub.f32 %v181, %v859
    %v861 = vand.u32 %v860, 4294901760
    %862 = vmatpush1.msra.mxu0 %v861
    %863 = vmatprep.subr.mxu0 0.0
    %v864 = vand.u32 %v182, 4294901760
    %v865 = vsub.f32 %v182, %v864
    %v866 = vand.u32 %v865, 4294901760
    %867 = vmatpush1.msra.mxu0 %v866
    %868 = vmatprep.subr.mxu0 0.0
    %v869 = vand.u32 %v183, 4294901760
    %v870 = vsub.f32 %v183, %v869
    %v871 = vand.u32 %v870, 4294901760
    %872 = vmatpush1.msra.mxu0 %v871
    %873 = vmatprep.subr.mxu0 0.0
    %v874 = vand.u32 %v184, 4294901760
    %v875 = vsub.f32 %v184, %v874
    %v876 = vand.u32 %v875, 4294901760
    %877 = vmatpush1.msra.mxu0 %v876
    %878 = vmatprep.subr.mxu0 0.0
    %v879 = vand.u32 %v185, 4294901760
    %v880 = vsub.f32 %v185, %v879
    %v881 = vand.u32 %v880, 4294901760
    %882 = vmatpush1.msra.mxu0 %v881
    %883 = vmatprep.subr.mxu0 0.0
    %v884 = vand.u32 %v186, 4294901760
    %v885 = vsub.f32 %v186, %v884
    %v886 = vand.u32 %v885, 4294901760
    %887 = vmatpush1.msra.mxu0 %v886
    %888 = vmatprep.subr.mxu0 0.0
    %v889 = vand.u32 %v187, 4294901760
    %v890 = vsub.f32 %v187, %v889
    %v891 = vand.u32 %v890, 4294901760
    %892 = vmatpush1.msra.mxu0 %v891
    %893 = vmatprep.subr.mxu0 0.0
    %v894 = vand.u32 %v188, 4294901760
    %v895 = vsub.f32 %v188, %v894
    %v896 = vand.u32 %v895, 4294901760
    %897 = vmatpush1.msra.mxu0 %v896
    %898 = vmatprep.subr.mxu0 0.0
    %v899 = vand.u32 %v189, 4294901760
    %v900 = vsub.f32 %v189, %v899
    %v901 = vand.u32 %v900, 4294901760
    %902 = vmatpush1.msra.mxu0 %v901
    %903 = vmatprep.subr.mxu0 0.0
    %v904 = vand.u32 %v190, 4294901760
    %v905 = vsub.f32 %v190, %v904
    %v906 = vand.u32 %v905, 4294901760
    %907 = vmatpush1.msra.mxu0 %v906
    %908 = vmatprep.subr.mxu0 0.0
    %v909 = vand.u32 %v191, 4294901760
    %v910 = vsub.f32 %v191, %v909
    %v911 = vand.u32 %v910, 4294901760
    %912 = vmatpush1.msra.mxu0 %v911
    %913 = vmatprep.subr.mxu0 0.0
    %v914 = vand.u32 %v192, 4294901760
    %v915 = vsub.f32 %v192, %v914
    %v916 = vand.u32 %v915, 4294901760
    %917 = vmatpush1.msra.mxu0 %v916
    %918 = vmatprep.subr.mxu0 0.0
    %v919 = vand.u32 %v193, 4294901760
    %v920 = vsub.f32 %v193, %v919
    %v921 = vand.u32 %v920, 4294901760
    %922 = vmatpush1.msra.mxu0 %v921
    %923 = vmatprep.subr.mxu0 0.0
    %v924 = vand.u32 %v194, 4294901760
    %v925 = vsub.f32 %v194, %v924
    %v926 = vand.u32 %v925, 4294901760
    %927 = vmatpush1.msra.mxu0 %v926
    %928 = vmatprep.subr.mxu0 0.0
    %v929 = vand.u32 %v195, 4294901760
    %v930 = vsub.f32 %v195, %v929
    %v931 = vand.u32 %v930, 4294901760
    %932 = vmatpush1.msra.mxu0 %v931
    %933 = vmatprep.subr.mxu0 0.0
    %v934 = vand.u32 %v196, 4294901760
    %v935 = vsub.f32 %v196, %v934
    %v936 = vand.u32 %v935, 4294901760
    %937 = vmatpush1.msra.mxu0 %v936
    %938 = vmatprep.subr.mxu0 0.0
    %v939 = vand.u32 %v197, 4294901760
    %v940 = vsub.f32 %v197, %v939
    %v941 = vand.u32 %v940, 4294901760
    %942 = vmatpush1.msra.mxu0 %v941
    %943 = vmatprep.subr.mxu0 0.0
    %v944 = vand.u32 %v198, 4294901760
    %v945 = vsub.f32 %v198, %v944
    %v946 = vand.u32 %v945, 4294901760
    %947 = vmatpush1.msra.mxu0 %v946
    %948 = vmatprep.subr.mxu0 0.0
    %v949 = vand.u32 %v199, 4294901760
    %v950 = vsub.f32 %v199, %v949
    %v951 = vand.u32 %v950, 4294901760
    %952 = vmatpush1.msra.mxu0 %v951
    %953 = vmatprep.subr.mxu0 0.0
    %v954 = vand.u32 %v200, 4294901760
    %v955 = vsub.f32 %v200, %v954
    %v956 = vand.u32 %v955, 4294901760
    %957 = vmatpush1.msra.mxu0 %v956
    %958 = vmatprep.subr.mxu0 0.0
    %v959 = vand.u32 %v201, 4294901760
    %v960 = vsub.f32 %v201, %v959
    %v961 = vand.u32 %v960, 4294901760
    %962 = vmatpush1.msra.mxu0 %v961
    %963 = vmatprep.subr.mxu0 0.0
    %v964 = vand.u32 %v202, 4294901760
    %v965 = vsub.f32 %v202, %v964
    %v966 = vand.u32 %v965, 4294901760
    %967 = vmatpush1.msra.mxu0 %v966
    %968 = vmatprep.subr.mxu0 0.0
    %v969 = vand.u32 %v203, 4294901760
    %v970 = vsub.f32 %v203, %v969
    %v971 = vand.u32 %v970, 4294901760
    %972 = vmatpush1.msra.mxu0 %v971
    %973 = vmatprep.subr.mxu0 0.0
    %v974 = vand.u32 %v204, 4294901760
    %v975 = vsub.f32 %v204, %v974
    %v976 = vand.u32 %v975, 4294901760
    %977 = vmatpush1.msra.mxu0 %v976
    %v978 = vand.u32 %v171, 4294901760
    %979 = vmatprep.mubr.f32.mxu0 %v978
    %v980 = vand.u32 %v170, 4294901760
    %981 = vmatmul.mubr.f32.gmra.mrb[0].mxu0 %v980
    %v982 = vpop.f32.mrb[0].mxu0
    %v983 = vadd.f32 %v815, %v982
    %v984 = vpop.f32.mrb[0].mxu0
    %985 = vdwg.mxu0
    %986 = vmatprep.subr.mxu0 0.0
    %v987 = vand.u32 %v173, 4294901760
    %988 = vmatpush1.msra.mxu0 %v987
    %989 = vmatprep.subr.mxu0 0.0
    %v990 = vand.u32 %v174, 4294901760
    %991 = vmatpush1.msra.mxu0 %v990
    %992 = vmatprep.subr.mxu0 0.0
    %v993 = vand.u32 %v175, 4294901760
    %994 = vmatpush1.msra.mxu0 %v993
    %995 = vmatprep.subr.mxu0 0.0
    %v996 = vand.u32 %v176, 4294901760
    %997 = vmatpush1.msra.mxu0 %v996
    %998 = vmatprep.subr.mxu0 0.0
    %v999 = vand.u32 %v177, 4294901760
    %1000 = vmatpush1.msra.mxu0 %v999
    %1001 = vmatprep.subr.mxu0 0.0
    %v1002 = vand.u32 %v178, 4294901760
    %1003 = vmatpush1.msra.mxu0 %v1002
    %1004 = vmatprep.subr.mxu0 0.0
    %v1005 = vand.u32 %v179, 4294901760
    %1006 = vmatpush1.msra.mxu0 %v1005
    %1007 = vmatprep.subr.mxu0 0.0
    %v1008 = vand.u32 %v180, 4294901760
    %1009 = vmatpush1.msra.mxu0 %v1008
    %1010 = vmatprep.subr.mxu0 0.0
    %v1011 = vand.u32 %v181, 4294901760
    %1012 = vmatpush1.msra.mxu0 %v1011
    %1013 = vmatprep.subr.mxu0 0.0
    %v1014 = vand.u32 %v182, 4294901760
    %1015 = vmatpush1.msra.mxu0 %v1014
    %1016 = vmatprep.subr.mxu0 0.0
    %v1017 = vand.u32 %v183, 4294901760
    %1018 = vmatpush1.msra.mxu0 %v1017
    %1019 = vmatprep.subr.mxu0 0.0
    %v1020 = vand.u32 %v184, 4294901760
    %1021 = vmatpush1.msra.mxu0 %v1020
    %1022 = vmatprep.subr.mxu0 0.0
    %v1023 = vand.u32 %v185, 4294901760
    %1024 = vmatpush1.msra.mxu0 %v1023
    %1025 = vmatprep.subr.mxu0 0.0
    %v1026 = vand.u32 %v186, 4294901760
    %1027 = vmatpush1.msra.mxu0 %v1026
    %1028 = vmatprep.subr.mxu0 0.0
    %v1029 = vand.u32 %v187, 4294901760
    %1030 = vmatpush1.msra.mxu0 %v1029
    %1031 = vmatprep.subr.mxu0 0.0
    %v1032 = vand.u32 %v188, 4294901760
    %1033 = vmatpush1.msra.mxu0 %v1032
    %1034 = vmatprep.subr.mxu0 0.0
    %v1035 = vand.u32 %v189, 4294901760
    %1036 = vmatpush1.msra.mxu0 %v1035
    %1037 = vmatprep.subr.mxu0 0.0
    %v1038 = vand.u32 %v190, 4294901760
    %1039 = vmatpush1.msra.mxu0 %v1038
    %1040 = vmatprep.subr.mxu0 0.0
    %v1041 = vand.u32 %v191, 4294901760
    %1042 = vmatpush1.msra.mxu0 %v1041
    %1043 = vmatprep.subr.mxu0 0.0
    %v1044 = vand.u32 %v192, 4294901760
    %1045 = vmatpush1.msra.mxu0 %v1044
    %1046 = vmatprep.subr.mxu0 0.0
    %v1047 = vand.u32 %v193, 4294901760
    %1048 = vmatpush1.msra.mxu0 %v1047
    %1049 = vmatprep.subr.mxu0 0.0
    %v1050 = vand.u32 %v194, 4294901760
    %1051 = vmatpush1.msra.mxu0 %v1050
    %1052 = vmatprep.subr.mxu0 0.0
    %v1053 = vand.u32 %v195, 4294901760
    %1054 = vmatpush1.msra.mxu0 %v1053
    %1055 = vmatprep.subr.mxu0 0.0
    %v1056 = vand.u32 %v196, 4294901760
    %1057 = vmatpush1.msra.mxu0 %v1056
    %1058 = vmatprep.subr.mxu0 0.0
    %v1059 = vand.u32 %v197, 4294901760
    %1060 = vmatpush1.msra.mxu0 %v1059
    %1061 = vmatprep.subr.mxu0 0.0
    %v1062 = vand.u32 %v198, 4294901760
    %1063 = vmatpush1.msra.mxu0 %v1062
    %1064 = vmatprep.subr.mxu0 0.0
    %v1065 = vand.u32 %v199, 4294901760
    %1066 = vmatpush1.msra.mxu0 %v1065
    %1067 = vmatprep.subr.mxu0 0.0
    %v1068 = vand.u32 %v200, 4294901760
    %1069 = vmatpush1.msra.mxu0 %v1068
    %1070 = vmatprep.subr.mxu0 0.0
    %v1071 = vand.u32 %v201, 4294901760
    %1072 = vmatpush1.msra.mxu0 %v1071
    %1073 = vmatprep.subr.mxu0 0.0
    %v1074 = vand.u32 %v202, 4294901760
    %1075 = vmatpush1.msra.mxu0 %v1074
    %1076 = vmatprep.subr.mxu0 0.0
    %v1077 = vand.u32 %v203, 4294901760
    %1078 = vmatpush1.msra.mxu0 %v1077
    %1079 = vmatprep.subr.mxu0 0.0
    %v1080 = vand.u32 %v204, 4294901760
    %1081 = vmatpush1.msra.mxu0 %v1080
    %v1082 = vand.u32 %v171, 4294901760
    %1083 = vmatprep.mubr.f32.mxu0 %v1082
    %v1084 = vand.u32 %v170, 4294901760
    %1085 = vmatmul.mubr.f32.gmra.mrb[0].mxu0 %v1084
    %v1086 = vpop.f32.mrb[0].mxu0
    %v1087 = vadd.f32 %v983, %v1086
    %v1088 = vpop.f32.mrb[0].mxu0
    %1089 = vdwg.mxu0
    %1090 = vmatprep.subr.mxu0 0.0
    %v1091 = vand.u32 %v205, 4294901760
    %1092 = vmatpush1.msra.mxu0 %v1091
    %1093 = vmatprep.subr.mxu0 0.0
    %v1094 = vand.u32 %v206, 4294901760
    %1095 = vmatpush1.msra.mxu0 %v1094
    %1096 = vmatprep.subr.mxu0 0.0
    %v1097 = vand.u32 %v207, 4294901760
    %1098 = vmatpush1.msra.mxu0 %v1097
    %1099 = vmatprep.subr.mxu0 0.0
    %v1100 = vand.u32 %v208, 4294901760
    %1101 = vmatpush1.msra.mxu0 %v1100
    %1102 = vmatprep.subr.mxu0 0.0
    %v1103 = vand.u32 %v209, 4294901760
    %1104 = vmatpush1.msra.mxu0 %v1103
    %1105 = vmatprep.subr.mxu0 0.0
    %v1106 = vand.u32 %v210, 4294901760
    %1107 = vmatpush1.msra.mxu0 %v1106
    %1108 = vmatprep.subr.mxu0 0.0
    %v1109 = vand.u32 %v211, 4294901760
    %1110 = vmatpush1.msra.mxu0 %v1109
    %1111 = vmatprep.subr.mxu0 0.0
    %v1112 = vand.u32 %v212, 4294901760
    %1113 = vmatpush1.msra.mxu0 %v1112
    %1114 = vmatprep.subr.mxu0 0.0
    %v1115 = vand.u32 %v213, 4294901760
    %1116 = vmatpush1.msra.mxu0 %v1115
    %1117 = vmatprep.subr.mxu0 0.0
    %v1118 = vand.u32 %v214, 4294901760
    %1119 = vmatpush1.msra.mxu0 %v1118
    %1120 = vmatprep.subr.mxu0 0.0
    %v1121 = vand.u32 %v215, 4294901760
    %1122 = vmatpush1.msra.mxu0 %v1121
    %1123 = vmatprep.subr.mxu0 0.0
    %v1124 = vand.u32 %v216, 4294901760
    %1125 = vmatpush1.msra.mxu0 %v1124
    %1126 = vmatprep.subr.mxu0 0.0
    %v1127 = vand.u32 %v217, 4294901760
    %1128 = vmatpush1.msra.mxu0 %v1127
    %1129 = vmatprep.subr.mxu0 0.0
    %v1130 = vand.u32 %v218, 4294901760
    %1131 = vmatpush1.msra.mxu0 %v1130
    %1132 = vmatprep.subr.mxu0 0.0
    %v1133 = vand.u32 %v219, 4294901760
    %1134 = vmatpush1.msra.mxu0 %v1133
    %1135 = vmatprep.subr.mxu0 0.0
    %v1136 = vand.u32 %v220, 4294901760
    %1137 = vmatpush1.msra.mxu0 %v1136
    %1138 = vmatprep.subr.mxu0 0.0
    %1139 = vmatpush1.msra.mxu0 0.0
    %1140 = vmatprep.subr.mxu0 0.0
    %1141 = vmatpush1.msra.mxu0 0.0
    %1142 = vmatprep.subr.mxu0 0.0
    %1143 = vmatpush1.msra.mxu0 0.0
    %1144 = vmatprep.subr.mxu0 0.0
    %1145 = vmatpush1.msra.mxu0 0.0
    %1146 = vmatprep.subr.mxu0 0.0
    %1147 = vmatpush1.msra.mxu0 0.0
    %1148 = vmatprep.subr.mxu0 0.0
    %1149 = vmatpush1.msra.mxu0 0.0
    %1150 = vmatprep.subr.mxu0 0.0
    %1151 = vmatpush1.msra.mxu0 0.0
    %1152 = vmatprep.subr.mxu0 0.0
    %1153 = vmatpush1.msra.mxu0 0.0
    %1154 = vmatprep.subr.mxu0 0.0
    %1155 = vmatpush1.msra.mxu0 0.0
    %1156 = vmatprep.subr.mxu0 0.0
    %1157 = vmatpush1.msra.mxu0 0.0
    %1158 = vmatprep.subr.mxu0 0.0
    %1159 = vmatpush1.msra.mxu0 0.0
    %1160 = vmatprep.subr.mxu0 0.0
    %1161 = vmatpush1.msra.mxu0 0.0
    %1162 = vmatprep.subr.mxu0 0.0
    %1163 = vmatpush1.msra.mxu0 0.0
    %1164 = vmatprep.subr.mxu0 0.0
    %1165 = vmatpush1.msra.mxu0 0.0
    %1166 = vmatprep.subr.mxu0 0.0
    %1167 = vmatpush1.msra.mxu0 0.0
    %1168 = vmatprep.subr.mxu0 0.0
    %1169 = vmatpush1.msra.mxu0 0.0
    %1170 = vmatprep.mubr.f32.mxu0 0.0
    %v1171 = vand.u32 %v172, 4294901760
    %v1172 = vsub.f32 %v172, %v1171
    %v1173 = vand.u32 %v1172, 4294901760
    %v1174 = vsub.f32 %v1172, %v1173
    %v1175 = vand.u32 %v1174, 4294901760
    %1176 = vmatmul.mubr.f32.gmra.mrb[0].mxu0 %v1175
    %v1177 = vpop.f32.mrb[0].mxu0
    %v1178 = vadd.f32 %v1087, %v1177
    %v1179 = vpop.f32.mrb[0].mxu0
    %1180 = vdwg.mxu0
    %1181 = vmatprep.subr.mxu0 0.0
    %v1182 = vand.u32 %v205, 4294901760
    %v1183 = vsub.f32 %v205, %v1182
    %v1184 = vand.u32 %v1183, 4294901760
    %v1185 = vsub.f32 %v1183, %v1184
    %v1186 = vand.u32 %v1185, 4294901760
    %1187 = vmatpush1.msra.mxu0 %v1186
    %1188 = vmatprep.subr.mxu0 0.0
    %v1189 = vand.u32 %v206, 4294901760
    %v1190 = vsub.f32 %v206, %v1189
    %v1191 = vand.u32 %v1190, 4294901760
    %v1192 = vsub.f32 %v1190, %v1191
    %v1193 = vand.u32 %v1192, 4294901760
    %1194 = vmatpush1.msra.mxu0 %v1193
    %1195 = vmatprep.subr.mxu0 0.0
    %v1196 = vand.u32 %v207, 4294901760
    %v1197 = vsub.f32 %v207, %v1196
    %v1198 = vand.u32 %v1197, 4294901760
    %v1199 = vsub.f32 %v1197, %v1198
    %v1200 = vand.u32 %v1199, 4294901760
    %1201 = vmatpush1.msra.mxu0 %v1200
    %1202 = vmatprep.subr.mxu0 0.0
    %v1203 = vand.u32 %v208, 4294901760
    %v1204 = vsub.f32 %v208, %v1203
    %v1205 = vand.u32 %v1204, 4294901760
    %v1206 = vsub.f32 %v1204, %v1205
    %v1207 = vand.u32 %v1206, 4294901760
    %1208 = vmatpush1.msra.mxu0 %v1207
    %1209 = vmatprep.subr.mxu0 0.0
    %v1210 = vand.u32 %v209, 4294901760
    %v1211 = vsub.f32 %v209, %v1210
    %v1212 = vand.u32 %v1211, 4294901760
    %v1213 = vsub.f32 %v1211, %v1212
    %v1214 = vand.u32 %v1213, 4294901760
    %1215 = vmatpush1.msra.mxu0 %v1214
    %1216 = vmatprep.subr.mxu0 0.0
    %v1217 = vand.u32 %v210, 4294901760
    %v1218 = vsub.f32 %v210, %v1217
    %v1219 = vand.u32 %v1218, 4294901760
    %v1220 = vsub.f32 %v1218, %v1219
    %v1221 = vand.u32 %v1220, 4294901760
    %1222 = vmatpush1.msra.mxu0 %v1221
    %1223 = vmatprep.subr.mxu0 0.0
    %v1224 = vand.u32 %v211, 4294901760
    %v1225 = vsub.f32 %v211, %v1224
    %v1226 = vand.u32 %v1225, 4294901760
    %v1227 = vsub.f32 %v1225, %v1226
    %v1228 = vand.u32 %v1227, 4294901760
    %1229 = vmatpush1.msra.mxu0 %v1228
    %1230 = vmatprep.subr.mxu0 0.0
    %v1231 = vand.u32 %v212, 4294901760
    %v1232 = vsub.f32 %v212, %v1231
    %v1233 = vand.u32 %v1232, 4294901760
    %v1234 = vsub.f32 %v1232, %v1233
    %v1235 = vand.u32 %v1234, 4294901760
    %1236 = vmatpush1.msra.mxu0 %v1235
    %1237 = vmatprep.subr.mxu0 0.0
    %v1238 = vand.u32 %v213, 4294901760
    %v1239 = vsub.f32 %v213, %v1238
    %v1240 = vand.u32 %v1239, 4294901760
    %v1241 = vsub.f32 %v1239, %v1240
    %v1242 = vand.u32 %v1241, 4294901760
    %1243 = vmatpush1.msra.mxu0 %v1242
    %1244 = vmatprep.subr.mxu0 0.0
    %v1245 = vand.u32 %v214, 4294901760
    %v1246 = vsub.f32 %v214, %v1245
    %v1247 = vand.u32 %v1246, 4294901760
    %v1248 = vsub.f32 %v1246, %v1247
    %v1249 = vand.u32 %v1248, 4294901760
    %1250 = vmatpush1.msra.mxu0 %v1249
    %1251 = vmatprep.subr.mxu0 0.0
    %v1252 = vand.u32 %v215, 4294901760
    %v1253 = vsub.f32 %v215, %v1252
    %v1254 = vand.u32 %v1253, 4294901760
    %v1255 = vsub.f32 %v1253, %v1254
    %v1256 = vand.u32 %v1255, 4294901760
    %1257 = vmatpush1.msra.mxu0 %v1256
    %1258 = vmatprep.subr.mxu0 0.0
    %v1259 = vand.u32 %v216, 4294901760
    %v1260 = vsub.f32 %v216, %v1259
    %v1261 = vand.u32 %v1260, 4294901760
    %v1262 = vsub.f32 %v1260, %v1261
    %v1263 = vand.u32 %v1262, 4294901760
    %1264 = vmatpush1.msra.mxu0 %v1263
    %1265 = vmatprep.subr.mxu0 0.0
    %v1266 = vand.u32 %v217, 4294901760
    %v1267 = vsub.f32 %v217, %v1266
    %v1268 = vand.u32 %v1267, 4294901760
    %v1269 = vsub.f32 %v1267, %v1268
    %v1270 = vand.u32 %v1269, 4294901760
    %1271 = vmatpush1.msra.mxu0 %v1270
    %1272 = vmatprep.subr.mxu0 0.0
    %v1273 = vand.u32 %v218, 4294901760
    %v1274 = vsub.f32 %v218, %v1273
    %v1275 = vand.u32 %v1274, 4294901760
    %v1276 = vsub.f32 %v1274, %v1275
    %v1277 = vand.u32 %v1276, 4294901760
    %1278 = vmatpush1.msra.mxu0 %v1277
    %1279 = vmatprep.subr.mxu0 0.0
    %v1280 = vand.u32 %v219, 4294901760
    %v1281 = vsub.f32 %v219, %v1280
    %v1282 = vand.u32 %v1281, 4294901760
    %v1283 = vsub.f32 %v1281, %v1282
    %v1284 = vand.u32 %v1283, 4294901760
    %1285 = vmatpush1.msra.mxu0 %v1284
    %1286 = vmatprep.subr.mxu0 0.0
    %v1287 = vand.u32 %v220, 4294901760
    %v1288 = vsub.f32 %v220, %v1287
    %v1289 = vand.u32 %v1288, 4294901760
    %v1290 = vsub.f32 %v1288, %v1289
    %v1291 = vand.u32 %v1290, 4294901760
    %1292 = vmatpush1.msra.mxu0 %v1291
    %1293 = vmatprep.subr.mxu0 0.0
    %1294 = vmatpush1.msra.mxu0 0.0
    %1295 = vmatprep.subr.mxu0 0.0
    %1296 = vmatpush1.msra.mxu0 0.0
    %1297 = vmatprep.subr.mxu0 0.0
    %1298 = vmatpush1.msra.mxu0 0.0
    %1299 = vmatprep.subr.mxu0 0.0
    %1300 = vmatpush1.msra.mxu0 0.0
    %1301 = vmatprep.subr.mxu0 0.0
    %1302 = vmatpush1.msra.mxu0 0.0
    %1303 = vmatprep.subr.mxu0 0.0
    %1304 = vmatpush1.msra.mxu0 0.0
    %1305 = vmatprep.subr.mxu0 0.0
    %1306 = vmatpush1.msra.mxu0 0.0
    %1307 = vmatprep.subr.mxu0 0.0
    %1308 = vmatpush1.msra.mxu0 0.0
    %1309 = vmatprep.subr.mxu0 0.0
    %1310 = vmatpush1.msra.mxu0 0.0
    %1311 = vmatprep.subr.mxu0 0.0
    %1312 = vmatpush1.msra.mxu0 0.0
    %1313 = vmatprep.subr.mxu0 0.0
    %1314 = vmatpush1.msra.mxu0 0.0
    %1315 = vmatprep.subr.mxu0 0.0
    %1316 = vmatpush1.msra.mxu0 0.0
    %1317 = vmatprep.subr.mxu0 0.0
    %1318 = vmatpush1.msra.mxu0 0.0
    %1319 = vmatprep.subr.mxu0 0.0
    %1320 = vmatpush1.msra.mxu0 0.0
    %1321 = vmatprep.subr.mxu0 0.0
    %1322 = vmatpush1.msra.mxu0 0.0
    %1323 = vmatprep.subr.mxu0 0.0
    %1324 = vmatpush1.msra.mxu0 0.0
    %1325 = vmatprep.mubr.f32.mxu0 0.0
    %v1326 = vand.u32 %v172, 4294901760
    %1327 = vmatmul.mubr.f32.gmra.mrb[0].mxu0 %v1326
    %v1328 = vpop.f32.mrb[0].mxu0
    %v1329 = vadd.f32 %v1178, %v1328
    %v1330 = vpop.f32.mrb[0].mxu0
    %1331 = vdwg.mxu0
    %1332 = vmatprep.subr.mxu0 0.0
    %v1333 = vand.u32 %v205, 4294901760
    %v1334 = vsub.f32 %v205, %v1333
    %1335 = vmatpush1.msra.mxu0 %v1334
    %1336 = vmatprep.subr.mxu0 0.0
    %v1337 = vand.u32 %v206, 4294901760
    %v1338 = vsub.f32 %v206, %v1337
    %1339 = vmatpush1.msra.mxu0 %v1338
    %1340 = vmatprep.subr.mxu0 0.0
    %v1341 = vand.u32 %v207, 4294901760
    %v1342 = vsub.f32 %v207, %v1341
    %1343 = vmatpush1.msra.mxu0 %v1342
    %1344 = vmatprep.subr.mxu0 0.0
    %v1345 = vand.u32 %v208, 4294901760
    %v1346 = vsub.f32 %v208, %v1345
    %1347 = vmatpush1.msra.mxu0 %v1346
    %1348 = vmatprep.subr.mxu0 0.0
    %v1349 = vand.u32 %v209, 4294901760
    %v1350 = vsub.f32 %v209, %v1349
    %1351 = vmatpush1.msra.mxu0 %v1350
    %1352 = vmatprep.subr.mxu0 0.0
    %v1353 = vand.u32 %v210, 4294901760
    %v1354 = vsub.f32 %v210, %v1353
    %1355 = vmatpush1.msra.mxu0 %v1354
    %1356 = vmatprep.subr.mxu0 0.0
    %v1357 = vand.u32 %v211, 4294901760
    %v1358 = vsub.f32 %v211, %v1357
    %1359 = vmatpush1.msra.mxu0 %v1358
    %1360 = vmatprep.subr.mxu0 0.0
    %v1361 = vand.u32 %v212, 4294901760
    %v1362 = vsub.f32 %v212, %v1361
    %1363 = vmatpush1.msra.mxu0 %v1362
    %1364 = vmatprep.subr.mxu0 0.0
    %v1365 = vand.u32 %v213, 4294901760
    %v1366 = vsub.f32 %v213, %v1365
    %1367 = vmatpush1.msra.mxu0 %v1366
    %1368 = vmatprep.subr.mxu0 0.0
    %v1369 = vand.u32 %v214, 4294901760
    %v1370 = vsub.f32 %v214, %v1369
    %1371 = vmatpush1.msra.mxu0 %v1370
    %1372 = vmatprep.subr.mxu0 0.0
    %v1373 = vand.u32 %v215, 4294901760
    %v1374 = vsub.f32 %v215, %v1373
    %1375 = vmatpush1.msra.mxu0 %v1374
    %1376 = vmatprep.subr.mxu0 0.0
    %v1377 = vand.u32 %v216, 4294901760
    %v1378 = vsub.f32 %v216, %v1377
    %1379 = vmatpush1.msra.mxu0 %v1378
    %1380 = vmatprep.subr.mxu0 0.0
    %v1381 = vand.u32 %v217, 4294901760
    %v1382 = vsub.f32 %v217, %v1381
    %1383 = vmatpush1.msra.mxu0 %v1382
    %1384 = vmatprep.subr.mxu0 0.0
    %v1385 = vand.u32 %v218, 4294901760
    %v1386 = vsub.f32 %v218, %v1385
    %1387 = vmatpush1.msra.mxu0 %v1386
    %1388 = vmatprep.subr.mxu0 0.0
    %v1389 = vand.u32 %v219, 4294901760
    %v1390 = vsub.f32 %v219, %v1389
    %1391 = vmatpush1.msra.mxu0 %v1390
    %1392 = vmatprep.subr.mxu0 0.0
    %v1393 = vand.u32 %v220, 4294901760
    %v1394 = vsub.f32 %v220, %v1393
    %1395 = vmatpush1.msra.mxu0 %v1394
    %1396 = vmatprep.subr.mxu0 0.0
    %1397 = vmatpush1.msra.mxu0 0.0
    %1398 = vmatprep.subr.mxu0 0.0
    %1399 = vmatpush1.msra.mxu0 0.0
    %1400 = vmatprep.subr.mxu0 0.0
    %1401 = vmatpush1.msra.mxu0 0.0
    %1402 = vmatprep.subr.mxu0 0.0
    %1403 = vmatpush1.msra.mxu0 0.0
    %1404 = vmatprep.subr.mxu0 0.0
    %1405 = vmatpush1.msra.mxu0 0.0
    %1406 = vmatprep.subr.mxu0 0.0
    %1407 = vmatpush1.msra.mxu0 0.0
    %1408 = vmatprep.subr.mxu0 0.0
    %1409 = vmatpush1.msra.mxu0 0.0
    %1410 = vmatprep.subr.mxu0 0.0
    %1411 = vmatpush1.msra.mxu0 0.0
    %1412 = vmatprep.subr.mxu0 0.0
    %1413 = vmatpush1.msra.mxu0 0.0
    %1414 = vmatprep.subr.mxu0 0.0
    %1415 = vmatpush1.msra.mxu0 0.0
    %1416 = vmatprep.subr.mxu0 0.0
    %1417 = vmatpush1.msra.mxu0 0.0
    %1418 = vmatprep.subr.mxu0 0.0
    %1419 = vmatpush1.msra.mxu0 0.0
    %1420 = vmatprep.subr.mxu0 0.0
    %1421 = vmatpush1.msra.mxu0 0.0
    %1422 = vmatprep.subr.mxu0 0.0
    %1423 = vmatpush1.msra.mxu0 0.0
    %1424 = vmatprep.subr.mxu0 0.0
    %1425 = vmatpush1.msra.mxu0 0.0
    %1426 = vmatprep.subr.mxu0 0.0
    %1427 = vmatpush1.msra.mxu0 0.0
    %1428 = vmatprep.mubr.f32.mxu0 0.0
    %v1429 = vand.u32 %v172, 4294901760
    %v1430 = vsub.f32 %v172, %v1429
    %1431 = vmatmul.mubr.f32.gmra.mrb[0].mxu0 %v1430
    %v1432 = vpop.f32.mrb[0].mxu0
    %v1433 = vadd.f32 %v1329, %v1432
    %v1434 = vpop.f32.mrb[0].mxu0
    %1435 = vdwg.mxu0
    %1436 = vmatprep.subr.mxu0 0.0
    %v1437 = vand.u32 %v205, 4294901760
    %1438 = vmatpush1.msra.mxu0 %v1437
    %1439 = vmatprep.subr.mxu0 0.0
    %v1440 = vand.u32 %v206, 4294901760
    %1441 = vmatpush1.msra.mxu0 %v1440
    %1442 = vmatprep.subr.mxu0 0.0
    %v1443 = vand.u32 %v207, 4294901760
    %1444 = vmatpush1.msra.mxu0 %v1443
    %1445 = vmatprep.subr.mxu0 0.0
    %v1446 = vand.u32 %v208, 4294901760
    %1447 = vmatpush1.msra.mxu0 %v1446
    %1448 = vmatprep.subr.mxu0 0.0
    %v1449 = vand.u32 %v209, 4294901760
    %1450 = vmatpush1.msra.mxu0 %v1449
    %1451 = vmatprep.subr.mxu0 0.0
    %v1452 = vand.u32 %v210, 4294901760
    %1453 = vmatpush1.msra.mxu0 %v1452
    %1454 = vmatprep.subr.mxu0 0.0
    %v1455 = vand.u32 %v211, 4294901760
    %1456 = vmatpush1.msra.mxu0 %v1455
    %1457 = vmatprep.subr.mxu0 0.0
    %v1458 = vand.u32 %v212, 4294901760
    %1459 = vmatpush1.msra.mxu0 %v1458
    %1460 = vmatprep.subr.mxu0 0.0
    %v1461 = vand.u32 %v213, 4294901760
    %1462 = vmatpush1.msra.mxu0 %v1461
    %1463 = vmatprep.subr.mxu0 0.0
    %v1464 = vand.u32 %v214, 4294901760
    %1465 = vmatpush1.msra.mxu0 %v1464
    %1466 = vmatprep.subr.mxu0 0.0
    %v1467 = vand.u32 %v215, 4294901760
    %1468 = vmatpush1.msra.mxu0 %v1467
    %1469 = vmatprep.subr.mxu0 0.0
    %v1470 = vand.u32 %v216, 4294901760
    %1471 = vmatpush1.msra.mxu0 %v1470
    %1472 = vmatprep.subr.mxu0 0.0
    %v1473 = vand.u32 %v217, 4294901760
    %1474 = vmatpush1.msra.mxu0 %v1473
    %1475 = vmatprep.subr.mxu0 0.0
    %v1476 = vand.u32 %v218, 4294901760
    %1477 = vmatpush1.msra.mxu0 %v1476
    %1478 = vmatprep.subr.mxu0 0.0
    %v1479 = vand.u32 %v219, 4294901760
    %1480 = vmatpush1.msra.mxu0 %v1479
    %1481 = vmatprep.subr.mxu0 0.0
    %v1482 = vand.u32 %v220, 4294901760
    %1483 = vmatpush1.msra.mxu0 %v1482
    %1484 = vmatprep.subr.mxu0 0.0
    %1485 = vmatpush1.msra.mxu0 0.0
    %1486 = vmatprep.subr.mxu0 0.0
    %1487 = vmatpush1.msra.mxu0 0.0
    %1488 = vmatprep.subr.mxu0 0.0
    %1489 = vmatpush1.msra.mxu0 0.0
    %1490 = vmatprep.subr.mxu0 0.0
    %1491 = vmatpush1.msra.mxu0 0.0
    %1492 = vmatprep.subr.mxu0 0.0
    %1493 = vmatpush1.msra.mxu0 0.0
    %1494 = vmatprep.subr.mxu0 0.0
    %1495 = vmatpush1.msra.mxu0 0.0
    %1496 = vmatprep.subr.mxu0 0.0
    %1497 = vmatpush1.msra.mxu0 0.0
    %1498 = vmatprep.subr.mxu0 0.0
    %1499 = vmatpush1.msra.mxu0 0.0
    %1500 = vmatprep.subr.mxu0 0.0
    %1501 = vmatpush1.msra.mxu0 0.0
    %1502 = vmatprep.subr.mxu0 0.0
    %1503 = vmatpush1.msra.mxu0 0.0
    %1504 = vmatprep.subr.mxu0 0.0
    %1505 = vmatpush1.msra.mxu0 0.0
    %1506 = vmatprep.subr.mxu0 0.0
    %1507 = vmatpush1.msra.mxu0 0.0
    %1508 = vmatprep.subr.mxu0 0.0
    %1509 = vmatpush1.msra.mxu0 0.0
    %1510 = vmatprep.subr.mxu0 0.0
    %1511 = vmatpush1.msra.mxu0 0.0
    %1512 = vmatprep.subr.mxu0 0.0
    %1513 = vmatpush1.msra.mxu0 0.0
    %1514 = vmatprep.subr.mxu0 0.0
    %1515 = vmatpush1.msra.mxu0 0.0
    %1516 = vmatprep.mubr.f32.mxu0 0.0
    %v1517 = vand.u32 %v172, 4294901760
    %v1518 = vsub.f32 %v172, %v1517
    %v1519 = vand.u32 %v1518, 4294901760
    %1520 = vmatmul.mubr.f32.gmra.mrb[0].mxu0 %v1519
    %v1521 = vpop.f32.mrb[0].mxu0
    %v1522 = vadd.f32 %v1433, %v1521
    %v1523 = vpop.f32.mrb[0].mxu0
    %1524 = vdwg.mxu0
    %1525 = vmatprep.subr.mxu0 0.0
    %v1526 = vand.u32 %v205, 4294901760
    %v1527 = vsub.f32 %v205, %v1526
    %v1528 = vand.u32 %v1527, 4294901760
    %1529 = vmatpush1.msra.mxu0 %v1528
    %1530 = vmatprep.subr.mxu0 0.0
    %v1531 = vand.u32 %v206, 4294901760
    %v1532 = vsub.f32 %v206, %v1531
    %v1533 = vand.u32 %v1532, 4294901760
    %1534 = vmatpush1.msra.mxu0 %v1533
    %1535 = vmatprep.subr.mxu0 0.0
    %v1536 = vand.u32 %v207, 4294901760
    %v1537 = vsub.f32 %v207, %v1536
    %v1538 = vand.u32 %v1537, 4294901760
    %1539 = vmatpush1.msra.mxu0 %v1538
    %1540 = vmatprep.subr.mxu0 0.0
    %v1541 = vand.u32 %v208, 4294901760
    %v1542 = vsub.f32 %v208, %v1541
    %v1543 = vand.u32 %v1542, 4294901760
    %1544 = vmatpush1.msra.mxu0 %v1543
    %1545 = vmatprep.subr.mxu0 0.0
    %v1546 = vand.u32 %v209, 4294901760
    %v1547 = vsub.f32 %v209, %v1546
    %v1548 = vand.u32 %v1547, 4294901760
    %1549 = vmatpush1.msra.mxu0 %v1548
    %1550 = vmatprep.subr.mxu0 0.0
    %v1551 = vand.u32 %v210, 4294901760
    %v1552 = vsub.f32 %v210, %v1551
    %v1553 = vand.u32 %v1552, 4294901760
    %1554 = vmatpush1.msra.mxu0 %v1553
    %1555 = vmatprep.subr.mxu0 0.0
    %v1556 = vand.u32 %v211, 4294901760
    %v1557 = vsub.f32 %v211, %v1556
    %v1558 = vand.u32 %v1557, 4294901760
    %1559 = vmatpush1.msra.mxu0 %v1558
    %1560 = vmatprep.subr.mxu0 0.0
    %v1561 = vand.u32 %v212, 4294901760
    %v1562 = vsub.f32 %v212, %v1561
    %v1563 = vand.u32 %v1562, 4294901760
    %1564 = vmatpush1.msra.mxu0 %v1563
    %1565 = vmatprep.subr.mxu0 0.0
    %v1566 = vand.u32 %v213, 4294901760
    %v1567 = vsub.f32 %v213, %v1566
    %v1568 = vand.u32 %v1567, 4294901760
    %1569 = vmatpush1.msra.mxu0 %v1568
    %1570 = vmatprep.subr.mxu0 0.0
    %v1571 = vand.u32 %v214, 4294901760
    %v1572 = vsub.f32 %v214, %v1571
    %v1573 = vand.u32 %v1572, 4294901760
    %1574 = vmatpush1.msra.mxu0 %v1573
    %1575 = vmatprep.subr.mxu0 0.0
    %v1576 = vand.u32 %v215, 4294901760
    %v1577 = vsub.f32 %v215, %v1576
    %v1578 = vand.u32 %v1577, 4294901760
    %1579 = vmatpush1.msra.mxu0 %v1578
    %1580 = vmatprep.subr.mxu0 0.0
    %v1581 = vand.u32 %v216, 4294901760
    %v1582 = vsub.f32 %v216, %v1581
    %v1583 = vand.u32 %v1582, 4294901760
    %1584 = vmatpush1.msra.mxu0 %v1583
    %1585 = vmatprep.subr.mxu0 0.0
    %v1586 = vand.u32 %v217, 4294901760
    %v1587 = vsub.f32 %v217, %v1586
    %v1588 = vand.u32 %v1587, 4294901760
    %1589 = vmatpush1.msra.mxu0 %v1588
    %1590 = vmatprep.subr.mxu0 0.0
    %v1591 = vand.u32 %v218, 4294901760
    %v1592 = vsub.f32 %v218, %v1591
    %v1593 = vand.u32 %v1592, 4294901760
    %1594 = vmatpush1.msra.mxu0 %v1593
    %1595 = vmatprep.subr.mxu0 0.0
    %v1596 = vand.u32 %v219, 4294901760
    %v1597 = vsub.f32 %v219, %v1596
    %v1598 = vand.u32 %v1597, 4294901760
    %1599 = vmatpush1.msra.mxu0 %v1598
    %1600 = vmatprep.subr.mxu0 0.0
    %v1601 = vand.u32 %v220, 4294901760
    %v1602 = vsub.f32 %v220, %v1601
    %v1603 = vand.u32 %v1602, 4294901760
    %1604 = vmatpush1.msra.mxu0 %v1603
    %1605 = vmatprep.subr.mxu0 0.0
    %1606 = vmatpush1.msra.mxu0 0.0
    %1607 = vmatprep.subr.mxu0 0.0
    %1608 = vmatpush1.msra.mxu0 0.0
    %1609 = vmatprep.subr.mxu0 0.0
    %1610 = vmatpush1.msra.mxu0 0.0
    %1611 = vmatprep.subr.mxu0 0.0
    %1612 = vmatpush1.msra.mxu0 0.0
    %1613 = vmatprep.subr.mxu0 0.0
    %1614 = vmatpush1.msra.mxu0 0.0
    %1615 = vmatprep.subr.mxu0 0.0
    %1616 = vmatpush1.msra.mxu0 0.0
    %1617 = vmatprep.subr.mxu0 0.0
    %1618 = vmatpush1.msra.mxu0 0.0
    %1619 = vmatprep.subr.mxu0 0.0
    %1620 = vmatpush1.msra.mxu0 0.0
    %1621 = vmatprep.subr.mxu0 0.0
    %1622 = vmatpush1.msra.mxu0 0.0
    %1623 = vmatprep.subr.mxu0 0.0
    %1624 = vmatpush1.msra.mxu0 0.0
    %1625 = vmatprep.subr.mxu0 0.0
    %1626 = vmatpush1.msra.mxu0 0.0
    %1627 = vmatprep.subr.mxu0 0.0
    %1628 = vmatpush1.msra.mxu0 0.0
    %1629 = vmatprep.subr.mxu0 0.0
    %1630 = vmatpush1.msra.mxu0 0.0
    %1631 = vmatprep.subr.mxu0 0.0
    %1632 = vmatpush1.msra.mxu0 0.0
    %1633 = vmatprep.subr.mxu0 0.0
    %1634 = vmatpush1.msra.mxu0 0.0
    %1635 = vmatprep.subr.mxu0 0.0
    %1636 = vmatpush1.msra.mxu0 0.0
    %1637 = vmatprep.mubr.f32.mxu0 0.0
    %v1638 = vand.u32 %v172, 4294901760
    %1639 = vmatmul.mubr.f32.gmra.mrb[0].mxu0 %v1638
    %v1640 = vpop.f32.mrb[0].mxu0
    %v1641 = vadd.f32 %v1522, %v1640
    %v1642 = vpop.f32.mrb[0].mxu0
    %1643 = vdwg.mxu0
    %1644 = vmatprep.subr.mxu0 0.0
    %v1645 = vand.u32 %v205, 4294901760
    %1646 = vmatpush1.msra.mxu0 %v1645
    %1647 = vmatprep.subr.mxu0 0.0
    %v1648 = vand.u32 %v206, 4294901760
    %1649 = vmatpush1.msra.mxu0 %v1648
    %1650 = vmatprep.subr.mxu0 0.0
    %v1651 = vand.u32 %v207, 4294901760
    %1652 = vmatpush1.msra.mxu0 %v1651
    %1653 = vmatprep.subr.mxu0 0.0
    %v1654 = vand.u32 %v208, 4294901760
    %1655 = vmatpush1.msra.mxu0 %v1654
    %1656 = vmatprep.subr.mxu0 0.0
    %v1657 = vand.u32 %v209, 4294901760
    %1658 = vmatpush1.msra.mxu0 %v1657
    %1659 = vmatprep.subr.mxu0 0.0
    %v1660 = vand.u32 %v210, 4294901760
    %1661 = vmatpush1.msra.mxu0 %v1660
    %1662 = vmatprep.subr.mxu0 0.0
    %v1663 = vand.u32 %v211, 4294901760
    %1664 = vmatpush1.msra.mxu0 %v1663
    %1665 = vmatprep.subr.mxu0 0.0
    %v1666 = vand.u32 %v212, 4294901760
    %1667 = vmatpush1.msra.mxu0 %v1666
    %1668 = vmatprep.subr.mxu0 0.0
    %v1669 = vand.u32 %v213, 4294901760
    %1670 = vmatpush1.msra.mxu0 %v1669
    %1671 = vmatprep.subr.mxu0 0.0
    %v1672 = vand.u32 %v214, 4294901760
    %1673 = vmatpush1.msra.mxu0 %v1672
    %1674 = vmatprep.subr.mxu0 0.0
    %v1675 = vand.u32 %v215, 4294901760
    %1676 = vmatpush1.msra.mxu0 %v1675
    %1677 = vmatprep.subr.mxu0 0.0
    %v1678 = vand.u32 %v216, 4294901760
    %1679 = vmatpush1.msra.mxu0 %v1678
    %1680 = vmatprep.subr.mxu0 0.0
    %v1681 = vand.u32 %v217, 4294901760
    %1682 = vmatpush1.msra.mxu0 %v1681
    %1683 = vmatprep.subr.mxu0 0.0
    %v1684 = vand.u32 %v218, 4294901760
    %1685 = vmatpush1.msra.mxu0 %v1684
    %1686 = vmatprep.subr.mxu0 0.0
    %v1687 = vand.u32 %v219, 4294901760
    %1688 = vmatpush1.msra.mxu0 %v1687
    %1689 = vmatprep.subr.mxu0 0.0
    %v1690 = vand.u32 %v220, 4294901760
    %1691 = vmatpush1.msra.mxu0 %v1690
    %1692 = vmatprep.subr.mxu0 0.0
    %1693 = vmatpush1.msra.mxu0 0.0
    %1694 = vmatprep.subr.mxu0 0.0
    %1695 = vmatpush1.msra.mxu0 0.0
    %1696 = vmatprep.subr.mxu0 0.0
    %1697 = vmatpush1.msra.mxu0 0.0
    %1698 = vmatprep.subr.mxu0 0.0
    %1699 = vmatpush1.msra.mxu0 0.0
    %1700 = vmatprep.subr.mxu0 0.0
    %1701 = vmatpush1.msra.mxu0 0.0
    %1702 = vmatprep.subr.mxu0 0.0
    %1703 = vmatpush1.msra.mxu0 0.0
    %1704 = vmatprep.subr.mxu0 0.0
    %1705 = vmatpush1.msra.mxu0 0.0
    %1706 = vmatprep.subr.mxu0 0.0
    %1707 = vmatpush1.msra.mxu0 0.0
    %1708 = vmatprep.subr.mxu0 0.0
    %1709 = vmatpush1.msra.mxu0 0.0
    %1710 = vmatprep.subr.mxu0 0.0
    %1711 = vmatpush1.msra.mxu0 0.0
    %1712 = vmatprep.subr.mxu0 0.0
    %1713 = vmatpush1.msra.mxu0 0.0
    %1714 = vmatprep.subr.mxu0 0.0
    %1715 = vmatpush1.msra.mxu0 0.0
    %1716 = vmatprep.subr.mxu0 0.0
    %1717 = vmatpush1.msra.mxu0 0.0
    %1718 = vmatprep.subr.mxu0 0.0
    %1719 = vmatpush1.msra.mxu0 0.0
    %1720 = vmatprep.subr.mxu0 0.0
    %1721 = vmatpush1.msra.mxu0 0.0
    %1722 = vmatprep.subr.mxu0 0.0
    %1723 = vmatpush1.msra.mxu0 0.0
    %1724 = vmatprep.mubr.f32.mxu0 0.0
    %v1725 = vand.u32 %v172, 4294901760
    %1726 = vmatmul.mubr.f32.gmra.mrb[0].mxu0 %v1725
    %v1727 = vpop.f32.mrb[0].mxu0
    %v1728 = vadd.f32 %v1641, %v1727
    %v1729 = vpop.f32.mrb[0].mxu0
    %1730 = vdwg.mxu0
    %v1731 = vtanh.pop %v1728
    %vm1732 = vcmask 7168
    %1733 = vst.msk [vmem:[%s5] sm:$0xff] %vm1732, %v1731
    %v1734 = vmul.f32 %v1728, 1.442695
    %v1735 = vpow.pop %v1734
    %1737 = vrot.lane.b32.xlu0 %v1735, 127
    %v1738 = vpop.permute.xlu0 %1737
    %1740 = vst.msk [vmem:[%s6] sm:$0xff] %vm1732, %v1738
    // Predicated region
    $region26: #{tpu_custom_call.1} parent=1 // pred_check
      _
    $region27: #{tpu_custom_call.1} parent=1 // pred_check_branch
      %1742 = sbr.rel (0) target = $region29
    $region28: #{tpu_custom_call.1} parent=1 // pred_region
      _
    $region29: #{tpu_custom_call.1} parent=1 // pred_fallthru
      _
    // Predicated region
    $region30: #{tpu_custom_call.1} parent=1 // pred_check
      _
    $region31: #{tpu_custom_call.1} parent=1 // pred_check_branch
      %1744 = sbr.rel (0) target = $region33
    $region32: #{tpu_custom_call.1} parent=1 // pred_region
      _
    $region33: #{tpu_custom_call.1} parent=1 // pred_fallthru
      _
    // Predicated region
    $region34: #{tpu_custom_call.1} parent=1 // pred_check
      _
    $region35: #{tpu_custom_call.1} parent=1 // pred_check_branch
      %1746 = sbr.rel (0) target = $region37
    $region36: #{tpu_custom_call.1} parent=1 // pred_region
      _
    $region37: #{tpu_custom_call.1} parent=1 // pred_fallthru
      _
    // Predicated region
    $region38: #{tpu_custom_call.1} parent=1 // pred_check
      _
    $region39: #{tpu_custom_call.1} parent=1 // pred_check_branch
      %1748 = sbr.rel (0) target = $region41
    $region40: #{tpu_custom_call.1} parent=1 // pred_region
      _
    $region41: #{tpu_custom_call.1} parent=1 // pred_fallthru
      _
    %1749 = vsyncpa [#allocation3], 1

</llo_original>
